<compile_context>
chip_gen: v6e
topology: v6e:2x2x1
jax: 0.10.0
libtpu: 0.0.40
codegen_flags: <defaults>
</compile_context>

<pallas_src>
import functools
import math

import jax
import jax.numpy as jnp
from jax.experimental import pallas as pl
from jax.experimental.pallas import tpu as pltpu

EMBED_DIM = 64                     # embed_dim
N_HEADS = 8                        # n_heads
HEAD_DIM = EMBED_DIM // N_HEADS    # 8
EXPANSION = 4                      # expansion_factor
HIDDEN = EXPANSION * EMBED_DIM     # 256
EPS = 1e-5                         # nn.LayerNorm default eps
QKV_DIM = 3 * EMBED_DIM            # 192 (fused [q|k|v] feature width)
HEAD_PACK = 3 * HEAD_DIM           # 24 lanes per head in the fused projection output
SMALL_COLS = max(HIDDEN, EMBED_DIM, 128)


def _layer_norm(x, gamma, beta):
    # PyTorch LayerNorm: biased variance over last dim, eps inside sqrt (f32).
    mean = jnp.mean(x, axis=-1, keepdims=True)
    var = jnp.mean((x - mean) ** 2, axis=-1, keepdims=True)
    inv = jax.lax.rsqrt(var + EPS)
    return (x - mean) * inv * gamma + beta


def _transformer_block_kernel(
    xqkv_ref,        # (TB*S, 192) bf16   [query | key | value] slab
    wqkv_ref,        # (192, 192) bf16    fused block-diag proj, head-major out cols, q-scale folded
    wo_ref,          # (H, D, E)  bf16    out-projection split per head (merge fused into matmul)
    w1_ref,          # (E, HIDDEN) bf16
    w2_ref,          # (HIDDEN, E) bf16
    small_ref,       # (8, SMALL_COLS) f32  packed biases / LayerNorm params
    out_ref,         # (TB*S, E) f32
    *, tb, seq_len, approx_softmax,
):
    n = tb * seq_len
    E, H, D = EMBED_DIM, N_HEADS, HEAD_DIM

    xqkv = xqkv_ref[...]                                   # (N, 192) bf16
    small = small_ref[...]                                 # (8, 256) f32
    b1 = small[0:1, :HIDDEN]                               # (1, 256)
    bo = small[1:2, :E]
    g1 = small[2:3, :E]
    be1 = small[3:4, :E]
    b2 = small[4:5, :E]
    g2 = small[5:6, :E]
    be2 = small[6:7, :E]

    # ---- fused Q/K/V projection: ONE (N,192)@(192,192) bf16 matmul, f32 accumulate ----
    # output columns are head-major: [h : q(0:8) k(8:16) v(16:24)], 1/sqrt(D) already in Q.
    qkvp = jnp.dot(xqkv, wqkv_ref[...], preferred_element_type=jnp.float32)   # (N, 192) f32

    # ---- head split: 8 slices of 24 lanes + one stack (leading-dim reshape is free) ----
    heads = jnp.stack(
        [qkvp[:, h * HEAD_PACK:(h + 1) * HEAD_PACK] for h in range(H)], axis=0
    )                                                      # (H, N, 24)
    heads = heads.reshape(H * tb, seq_len, HEAD_PACK)      # batch index = h*tb + b
    q3 = heads[:, :, 0:D].astype(jnp.bfloat16)             # (H*TB, S, D)
    k3 = heads[:, :, D:2 * D].astype(jnp.bfloat16)
    v3 = heads[:, :, 2 * D:3 * D].astype(jnp.bfloat16)

    # ---- batched per-(head, batch) attention ----
    logits = jnp.einsum("bqd,bkd->bqk", q3, k3,
                        preferred_element_type=jnp.float32)        # (H*TB, S, S) f32
    m = jnp.max(logits, axis=-1, keepdims=True)
    p = jnp.exp(logits - m)
    denom = jnp.sum(p, axis=-1, keepdims=True)
    if approx_softmax:
        p = p * pl.reciprocal(denom, approx=True)                  # EUP slot
    else:
        p = p / denom                                              # exact debug path
    ctx = jnp.einsum("bqk,bkd->bqd", p.astype(jnp.bfloat16), v3,
                     preferred_element_type=jnp.float32)           # (H*TB, S, D) f32

    # ---- head merge fused into the output projection (no lane-concat relayout) ----
    ctx_h = ctx.reshape(H, n, D).astype(jnp.bfloat16)              # leading-dim regroup, free
    attn = jnp.einsum("hnd,hde->hne", ctx_h, wo_ref[...],
                      preferred_element_type=jnp.float32)          # (H, N, E) f32
    attn = jnp.sum(attn, axis=0) + bo                              # (N, E)

    # ---- residual (with `value`, as in the PyTorch module) + norm1 ----
    xv = xqkv[:, 2 * E:3 * E].astype(jnp.float32)
    norm1 = _layer_norm(attn + xv, g1, be1)

    # ---- feed-forward: Linear -> SiLU -> Linear (dropout p=0.0 == identity) ----
    h1 = jnp.dot(norm1.astype(jnp.bfloat16), w1_ref[...],
                 preferred_element_type=jnp.float32) + b1
    h1 = h1 * jax.nn.sigmoid(h1)                                   # SiLU, f32
    ff = jnp.dot(h1.astype(jnp.bfloat16), w2_ref[...],
                 preferred_element_type=jnp.float32) + b2

    # ---- residual + norm2 ----
    out_ref[...] = _layer_norm(ff + norm1, g2, be2)


# ----------------------------- tiling / wrapper -------------------------------
def _vmem_estimate_bytes(tb, S):
    n = tb * S
    slab = n * QKV_DIM * 2
    out = n * EMBED_DIM * 4
    qkvp = n * QKV_DIM * 4
    heads = N_HEADS * n * HEAD_PACK * 4
    logits = 3 * N_HEADS * tb * S * S * 4
    ctx = N_HEADS * n * HEAD_DIM * 4
    attn = (N_HEADS + 2) * n * EMBED_DIM * 4
    ffn = 2 * n * HIDDEN * 4
    weights = (QKV_DIM * QKV_DIM * 2 + N_HEADS * HEAD_DIM * EMBED_DIM * 2
               + 2 * EMBED_DIM * HIDDEN * 2 + 8 * SMALL_COLS * 4)
    return 2 * (slab + out) + qkvp + heads + logits + ctx + attn + ffn + 2 * weights + (1 << 20)


def _pick_batch_tile(B, S, budget_bytes=32 << 20):
    # Largest tile with ~<=512 rows that fits the VMEM budget; keep >=2 grid steps
    # (v7x megacore) only if that still leaves >=128 rows per slab.
    candidates = [d for d in range(1, B + 1)
                  if B % d == 0
                  and (d == B or (d * S) % 16 == 0)           # bf16 sublane tiling on partial blocks
                  and _vmem_estimate_bytes(d, S) <= budget_bytes]
    if not candidates:
        return B
    preferred = [d for d in candidates if d * S <= 512] or candidates[:1]
    tb = max(preferred)
    if tb == B and B > 1:
        smaller = [d for d in candidates if d <= B // 2 and d * S >= 128]
        if smaller:
            tb = max(smaller)
    return tb


def transformer_block(key, query, value, params, *, batch_tile=None, approx_softmax=True):
    B, S, E = key.shape
    assert E == EMBED_DIM
    tb = _pick_batch_tile(B, S) if batch_tile is None else batch_tile
    assert B % tb == 0
    n = tb * S
    assert tb == B or n % 16 == 0, "row tile must be a multiple of 16 unless it spans the full batch"

    # Single wide bf16 [q|k|v] slab (halves input DMA bytes, 192-lane loads).
    xqkv = jnp.concatenate(
        [query.reshape(B * S, E), key.reshape(B * S, E), value.reshape(B * S, E)],
        axis=-1).astype(jnp.bfloat16)                                   # (B*S, 192)

    slab_spec = pl.BlockSpec((n, QKV_DIM), lambda i: (i, 0))
    out_spec = pl.BlockSpec((n, E), lambda i: (i, 0))

    def full_spec(a):
        zeros = (0,) * a.ndim
        return pl.BlockSpec(a.shape, lambda i, _z=zeros: _z)

    weights = [params["wqkv_k"], params["wo_k"], params["w1_k"], params["w2_k"],
               params["small_k"]]

    kernel = functools.partial(_transformer_block_kernel, tb=tb, seq_len=S,
                               approx_softmax=approx_softmax)

    cp = {"dimension_semantics": ("parallel",)}
    vmem_est = _vmem_estimate_bytes(tb, S)
    if vmem_est > (16 << 20):   # only raise above the conservative scoped default when needed
        cp["vmem_limit_bytes"] = min(max(vmem_est + (8 << 20), 32 << 20), 48 << 20)

    out_flat = pl.pallas_call(
        kernel,
        out_shape=jax.ShapeDtypeStruct((B * S, E), jnp.float32),
        grid=(B // tb,),
        in_specs=[slab_spec] + [full_spec(w) for w in weights],
        out_specs=out_spec,
        compiler_params=pltpu.CompilerParams(**cp),
    )(xqkv, *weights)
    return out_flat.reshape(B, S, E)


# ----------------------------- parameter init --------------------------------
def init_params(rng):
    ks = jax.random.split(rng, 9)
    D, E, Hd = HEAD_DIM, EMBED_DIM, HIDDEN

    def xavier(k, shape):  # (out, in)
        fan_out, fan_in = shape
        lim = math.sqrt(6.0 / (fan_in + fan_out))
        return jax.random.uniform(k, shape, jnp.float32, -lim, lim)

    def torch_linear(k, shape):  # PyTorch default U(-1/sqrt(fan_in), 1/sqrt(fan_in))
        lim = 1.0 / math.sqrt(shape[-1])
        return jax.random.uniform(k, shape, jnp.float32, -lim, lim)

    wq = xavier(ks[0], (D, D))
    wk = xavier(ks[1], (D, D))
    wv = xavier(ks[2], (D, D))
    wo = torch_linear(ks[3], (E, E))
    bo = torch_linear(ks[4], (E,))
    w1 = torch_linear(ks[5], (Hd, E))
    b1 = torch_linear(ks[6], (Hd,))
    w2 = torch_linear(ks[7], (E, Hd))
    b2 = torch_linear(ks[8], (E,))
    g1 = jnp.ones((E,), jnp.float32)
    be1 = jnp.zeros((E,), jnp.float32)
    g2 = jnp.ones((E,), jnp.float32)
    be2 = jnp.zeros((E,), jnp.float32)

    # ---- kernel-layout weights -------------------------------------------------
    scale = 1.0 / math.sqrt(D)
    eye_h = jnp.eye(N_HEADS, dtype=jnp.float32)
    base = jnp.zeros((QKV_DIM, QKV_DIM), jnp.float32)
    base = base.at[0:E, 0:E].set(jnp.kron(eye_h, wq.T) * scale)   # Q block, scale folded in
    base = base.at[E:2 * E, E:2 * E].set(jnp.kron(eye_h, wk.T))
    base = base.at[2 * E:3 * E, 2 * E:3 * E].set(jnp.kron(eye_h, wv.T))
    # permute OUTPUT columns to head-major packing: new col = h*24 + t*8 + d  <-  old t*64 + h*8 + d
    c = jnp.arange(QKV_DIM)
    h = c // HEAD_PACK
    t = (c % HEAD_PACK) // D
    d = c % D
    perm = t * E + h * D + d
    wqkv_k = base[:, perm].astype(jnp.bfloat16)

    wo_k = wo.T.reshape(N_HEADS, D, E).astype(jnp.bfloat16)       # per-head out-projection
    w1_k = w1.T.astype(jnp.bfloat16)
    w2_k = w2.T.astype(jnp.bfloat16)

    small = jnp.zeros((8, SMALL_COLS), jnp.float32)
    small = small.at[0, :Hd].set(b1)
    small = small.at[1, :E].set(bo)
    small = small.at[2, :E].set(g1)
    small = small.at[3, :E].set(be1)
    small = small.at[4, :E].set(b2)
    small = small.at[5, :E].set(g2)
    small = small.at[6, :E].set(be2)

    return {
        # PyTorch-shaped f32 params (reference)
        "wq": wq, "wk": wk, "wv": wv, "wo": wo, "bo": bo,
        "w1": w1, "b1": b1, "w2": w2, "b2": b2,
        "g1": g1, "be1": be1, "g2": g2, "be2": be2,
        # kernel-layout params
        "wqkv_k": wqkv_k, "wo_k": wo_k, "w1_k": w1_k, "w2_k": w2_k, "small_k": small,
    }


# ----------------------------- pure-JAX reference ----------------------------
def reference(key, query, value, p):
    B, S, E = key.shape
    D = HEAD_DIM

    k = key.reshape(B, S, N_HEADS, D)
    q = query.reshape(B, S, N_HEADS, D)
    v = value.reshape(B, S, N_HEADS, D)

    k = jnp.einsum("bshd,od->bsho", k, p["wk"])
    q = jnp.einsum("bshd,od->bsho", q, p["wq"])
    v = jnp.einsum("bshd,od->bsho", v, p["wv"])

    q = q.transpose(0, 2, 1, 3)
    k = k.transpose(0, 2, 1, 3)
    v = v.transpose(0, 2, 1, 3)

    prod = jnp.einsum("bhqd,bhkd->bhqk", q, k) / math.sqrt(D)
    scores = jax.nn.softmax(prod, axis=-1)
    ctx = jnp.einsum("bhqk,bhkd->bhqd", scores, v)
    concat = ctx.transpose(0, 2, 1, 3).reshape(B, S, E)
    attn = concat @ p["wo"].T + p["bo"]

    attn_res = attn + value

    def ln(x, g, b):
        mu = x.mean(-1, keepdims=True)
        var = ((x - mu) ** 2).mean(-1, keepdims=True)
        return (x - mu) / jnp.sqrt(var + EPS) * g + b

    norm1 = ln(attn_res, p["g1"], p["be1"])
    hh = norm1 @ p["w1"].T + p["b1"]
    hh = hh * jax.nn.sigmoid(hh)
    ff = hh @ p["w2"].T + p["b2"]
    return ln(ff + norm1, p["g2"], p["be2"])


if __name__ == "__main__":
    B, S = 2, 8
    root = jax.random.PRNGKey(0)
    kk, kq, kv, kp = jax.random.split(root, 4)

    key = jax.random.normal(kk, (B, S, EMBED_DIM), jnp.float32)
    query = jax.random.normal(kq, (B, S, EMBED_DIM), jnp.float32)
    value = jax.random.normal(kv, (B, S, EMBED_DIM), jnp.float32)

    params = init_params(kp)

    out = transformer_block(key, query, value, params)
    out = jax.block_until_ready(out)

    ref = reference(key, query, value, params)
    assert out.shape == (B, S, EMBED_DIM)
    # bf16 matmul operands / bf16 input slab (f32 accumulation) + approx softmax reciprocal
    err = float(jnp.max(jnp.abs(out - ref)))
    assert err < 5e-2, f"max abs error {err}"

    print("KERNEL_OK")
</pallas_src>

<mosaic_0001>
module attributes {stable_mosaic.version = 11 : i64} {
  func.func @_transformer_block_kernel(%arg0: i32, %arg1: memref<16x192xbf16, #tpu.memory_space<vmem>>, %arg2: memref<192x192xbf16, #tpu.memory_space<vmem>>, %arg3: memref<8x8x64xbf16, #tpu.memory_space<vmem>>, %arg4: memref<64x256xbf16, #tpu.memory_space<vmem>>, %arg5: memref<256x64xbf16, #tpu.memory_space<vmem>>, %arg6: memref<8x256xf32, #tpu.memory_space<vmem>>, %arg7: memref<16x64xf32, #tpu.memory_space<vmem>>) attributes {dimension_semantics = [#tpu.dimension_semantics<parallel>], iteration_bounds = array<i64: 1>, scalar_prefetch = 0 : i64, scratch_operands = 0 : i64, tpu.core_type = #tpu.core_type<tc>, window_params = [{transform_indices = @transform_0, window_bounds = array<i64: 16, 192>}, {pipeline_mode = #tpu.pipeline_mode<synchronous>, transform_indices = @transform_1, window_bounds = array<i64: 192, 192>}, {pipeline_mode = #tpu.pipeline_mode<synchronous>, transform_indices = @transform_2, window_bounds = array<i64: 8, 8, 64>}, {pipeline_mode = #tpu.pipeline_mode<synchronous>, transform_indices = @transform_3, window_bounds = array<i64: 64, 256>}, {pipeline_mode = #tpu.pipeline_mode<synchronous>, transform_indices = @transform_4, window_bounds = array<i64: 256, 64>}, {pipeline_mode = #tpu.pipeline_mode<synchronous>, transform_indices = @transform_5, window_bounds = array<i64: 8, 256>}, {transform_indices = @transform_6, window_bounds = array<i64: 16, 64>}]} {
    %c0 = arith.constant 0 : index
    %c0_0 = arith.constant 0 : index
    %0 = vector.load %arg1[%c0, %c0_0] : memref<16x192xbf16, #tpu.memory_space<vmem>>, vector<16x192xbf16>
    %c0_1 = arith.constant 0 : index
    %c0_2 = arith.constant 0 : index
    %1 = vector.load %arg6[%c0_1, %c0_2] : memref<8x256xf32, #tpu.memory_space<vmem>>, vector<8x256xf32>
    %2 = vector.extract_strided_slice %1 {offsets = [0, 0], sizes = [1, 256], strides = [1, 1]} : vector<8x256xf32> to vector<1x256xf32>
    %3 = vector.extract_strided_slice %1 {offsets = [1, 0], sizes = [1, 64], strides = [1, 1]} : vector<8x256xf32> to vector<1x64xf32>
    %4 = vector.extract_strided_slice %1 {offsets = [2, 0], sizes = [1, 64], strides = [1, 1]} : vector<8x256xf32> to vector<1x64xf32>
    %5 = vector.extract_strided_slice %1 {offsets = [3, 0], sizes = [1, 64], strides = [1, 1]} : vector<8x256xf32> to vector<1x64xf32>
    %6 = vector.extract_strided_slice %1 {offsets = [4, 0], sizes = [1, 64], strides = [1, 1]} : vector<8x256xf32> to vector<1x64xf32>
    %7 = vector.extract_strided_slice %1 {offsets = [5, 0], sizes = [1, 64], strides = [1, 1]} : vector<8x256xf32> to vector<1x64xf32>
    %8 = vector.extract_strided_slice %1 {offsets = [6, 0], sizes = [1, 64], strides = [1, 1]} : vector<8x256xf32> to vector<1x64xf32>
    %c0_3 = arith.constant 0 : index
    %c0_4 = arith.constant 0 : index
    %9 = vector.load %arg2[%c0_3, %c0_4] : memref<192x192xbf16, #tpu.memory_space<vmem>>, vector<192x192xbf16>
    %cst = arith.constant dense<0.000000e+00> : vector<16x192xf32>
    %10 = tpu.matmul %0, %9, %cst {dimension_numbers = #tpu.dot_dimension_numbers<[1], [0], [0], [1], [0, 0, 1, 1], [], []>} : vector<16x192xbf16>, vector<192x192xbf16>, vector<16x192xf32> -> vector<16x192xf32>
    %11 = vector.extract_strided_slice %10 {offsets = [0, 0], sizes = [16, 24], strides = [1, 1]} : vector<16x192xf32> to vector<16x24xf32>
    %12 = vector.extract_strided_slice %10 {offsets = [0, 24], sizes = [16, 24], strides = [1, 1]} : vector<16x192xf32> to vector<16x24xf32>
    %13 = vector.extract_strided_slice %10 {offsets = [0, 48], sizes = [16, 24], strides = [1, 1]} : vector<16x192xf32> to vector<16x24xf32>
    %14 = vector.extract_strided_slice %10 {offsets = [0, 72], sizes = [16, 24], strides = [1, 1]} : vector<16x192xf32> to vector<16x24xf32>
    %15 = vector.extract_strided_slice %10 {offsets = [0, 96], sizes = [16, 24], strides = [1, 1]} : vector<16x192xf32> to vector<16x24xf32>
    %16 = vector.extract_strided_slice %10 {offsets = [0, 120], sizes = [16, 24], strides = [1, 1]} : vector<16x192xf32> to vector<16x24xf32>
    %17 = vector.extract_strided_slice %10 {offsets = [0, 144], sizes = [16, 24], strides = [1, 1]} : vector<16x192xf32> to vector<16x24xf32>
    %18 = vector.extract_strided_slice %10 {offsets = [0, 168], sizes = [16, 24], strides = [1, 1]} : vector<16x192xf32> to vector<16x24xf32>
    %19 = vector.shape_cast %11 : vector<16x24xf32> to vector<1x16x24xf32>
    %20 = vector.shape_cast %12 : vector<16x24xf32> to vector<1x16x24xf32>
    %21 = vector.shape_cast %13 : vector<16x24xf32> to vector<1x16x24xf32>
    %22 = vector.shape_cast %14 : vector<16x24xf32> to vector<1x16x24xf32>
    %23 = vector.shape_cast %15 : vector<16x24xf32> to vector<1x16x24xf32>
    %24 = vector.shape_cast %16 : vector<16x24xf32> to vector<1x16x24xf32>
    %25 = vector.shape_cast %17 : vector<16x24xf32> to vector<1x16x24xf32>
    %26 = vector.shape_cast %18 : vector<16x24xf32> to vector<1x16x24xf32>
    %27 = tpu.concatenate %19, %20, %21, %22, %23, %24, %25, %26 in 0 : vector<1x16x24xf32>, vector<1x16x24xf32>, vector<1x16x24xf32>, vector<1x16x24xf32>, vector<1x16x24xf32>, vector<1x16x24xf32>, vector<1x16x24xf32>, vector<1x16x24xf32> -> vector<8x16x24xf32>
    %28 = vector.shape_cast %27 : vector<8x16x24xf32> to vector<16x8x24xf32>
    %29 = vector.extract_strided_slice %28 {offsets = [0, 0, 0], sizes = [16, 8, 8], strides = [1, 1, 1]} : vector<16x8x24xf32> to vector<16x8x8xf32>
    %30 = arith.truncf %29 : vector<16x8x8xf32> to vector<16x8x8xbf16>
    %31 = vector.extract_strided_slice %28 {offsets = [0, 0, 8], sizes = [16, 8, 8], strides = [1, 1, 1]} : vector<16x8x24xf32> to vector<16x8x8xf32>
    %32 = arith.truncf %31 : vector<16x8x8xf32> to vector<16x8x8xbf16>
    %33 = vector.extract_strided_slice %28 {offsets = [0, 0, 16], sizes = [16, 8, 8], strides = [1, 1, 1]} : vector<16x8x24xf32> to vector<16x8x8xf32>
    %34 = arith.truncf %33 : vector<16x8x8xf32> to vector<16x8x8xbf16>
    "tpu.trace_start"() <{level = 10 : i32, message = "bqd,bkd->bqk"}> : () -> ()
    %cst_5 = arith.constant dense<0.000000e+00> : vector<16x8x8xf32>
    %35 = tpu.matmul %30, %32, %cst_5 {dimension_numbers = #tpu.dot_dimension_numbers<[2], [2], [1], [1], [0, 0, 0, 1, 1, 1], [0], [0]>} : vector<16x8x8xbf16>, vector<16x8x8xbf16>, vector<16x8x8xf32> -> vector<16x8x8xf32>
    "tpu.trace_stop"() : () -> ()
    %cst_6 = arith.constant dense<0xFF800000> : vector<16x8xf32>
    %36 = vector.multi_reduction <maximumf>, %35, %cst_6 [2] : vector<16x8x8xf32> to vector<16x8xf32>
    %37 = vector.shape_cast %36 : vector<16x8xf32> to vector<16x8x1xf32>
    %38 = vector.broadcast %37 : vector<16x8x1xf32> to vector<16x8x8xf32>
    %39 = arith.subf %35, %38 : vector<16x8x8xf32>
    %40 = math.exp %39 : vector<16x8x8xf32>
    %cst_7 = arith.constant dense<0.000000e+00> : vector<16x8xf32>
    %41 = vector.multi_reduction <add>, %40, %cst_7 [2] : vector<16x8x8xf32> to vector<16x8xf32>
    %42 = vector.shape_cast %41 : vector<16x8xf32> to vector<16x8x1xf32>
    %43 = tpu.reciprocal %42 {approx = true} : vector<16x8x1xf32> -> vector<16x8x1xf32>
    %44 = vector.broadcast %43 : vector<16x8x1xf32> to vector<16x8x8xf32>
    %45 = arith.mulf %40, %44 : vector<16x8x8xf32>
    %46 = arith.truncf %45 : vector<16x8x8xf32> to vector<16x8x8xbf16>
    "tpu.trace_start"() <{level = 10 : i32, message = "bqk,bkd->bqd"}> : () -> ()
    %cst_8 = arith.constant dense<0.000000e+00> : vector<16x8x8xf32>
    %47 = tpu.matmul %46, %34, %cst_8 {dimension_numbers = #tpu.dot_dimension_numbers<[2], [1], [1], [2], [0, 0, 0, 1, 1, 2], [0], [0]>} : vector<16x8x8xbf16>, vector<16x8x8xbf16>, vector<16x8x8xf32> -> vector<16x8x8xf32>
    "tpu.trace_stop"() : () -> ()
    %48 = vector.shape_cast %47 : vector<16x8x8xf32> to vector<8x16x8xf32>
    %49 = arith.truncf %48 : vector<8x16x8xf32> to vector<8x16x8xbf16>
    %c0_9 = arith.constant 0 : index
    %c0_10 = arith.constant 0 : index
    %c0_11 = arith.constant 0 : index
    %50 = vector.load %arg3[%c0_9, %c0_10, %c0_11] : memref<8x8x64xbf16, #tpu.memory_space<vmem>>, vector<8x8x64xbf16>
    "tpu.trace_start"() <{level = 10 : i32, message = "hnd,hde->hne"}> : () -> ()
    %cst_12 = arith.constant dense<0.000000e+00> : vector<8x16x64xf32>
    %51 = tpu.matmul %49, %50, %cst_12 {dimension_numbers = #tpu.dot_dimension_numbers<[2], [1], [1], [2], [0, 0, 0, 1, 1, 2], [0], [0]>} : vector<8x16x8xbf16>, vector<8x8x64xbf16>, vector<8x16x64xf32> -> vector<8x16x64xf32>
    "tpu.trace_stop"() : () -> ()
    %cst_13 = arith.constant dense<0.000000e+00> : vector<16x64xf32>
    %52 = vector.multi_reduction <add>, %51, %cst_13 [0] : vector<8x16x64xf32> to vector<16x64xf32>
    %53 = vector.broadcast %3 : vector<1x64xf32> to vector<16x64xf32>
    %54 = arith.addf %52, %53 : vector<16x64xf32>
    %55 = vector.extract_strided_slice %0 {offsets = [0, 128], sizes = [16, 64], strides = [1, 1]} : vector<16x192xbf16> to vector<16x64xbf16>
    %56 = arith.extf %55 : vector<16x64xbf16> to vector<16x64xf32>
    %57 = arith.addf %54, %56 : vector<16x64xf32>
    %cst_14 = arith.constant dense<0.000000e+00> : vector<16xf32>
    %58 = vector.multi_reduction <add>, %57, %cst_14 [1] : vector<16x64xf32> to vector<16xf32>
    %59 = vector.shape_cast %58 : vector<16xf32> to vector<16x1xf32>
    %cst_15 = arith.constant 6.400000e+01 : f32
    %60 = vector.broadcast %cst_15 : f32 to vector<16x1xf32>
    %61 = arith.divf %59, %60 : vector<16x1xf32>
    %62 = vector.broadcast %61 : vector<16x1xf32> to vector<16x64xf32>
    %63 = arith.subf %57, %62 : vector<16x64xf32>
    %64 = arith.mulf %63, %63 : vector<16x64xf32>
    %cst_16 = arith.constant dense<0.000000e+00> : vector<16xf32>
    %65 = vector.multi_reduction <add>, %64, %cst_16 [1] : vector<16x64xf32> to vector<16xf32>
    %66 = vector.shape_cast %65 : vector<16xf32> to vector<16x1xf32>
    %cst_17 = arith.constant 6.400000e+01 : f32
    %67 = vector.broadcast %cst_17 : f32 to vector<16x1xf32>
    %68 = arith.divf %66, %67 : vector<16x1xf32>
    %cst_18 = arith.constant 9.99999974E-6 : f32
    %69 = vector.broadcast %cst_18 : f32 to vector<16x1xf32>
    %70 = arith.addf %68, %69 : vector<16x1xf32>
    %71 = math.rsqrt %70 : vector<16x1xf32>
    %72 = vector.broadcast %61 : vector<16x1xf32> to vector<16x64xf32>
    %73 = arith.subf %57, %72 : vector<16x64xf32>
    %74 = vector.broadcast %71 : vector<16x1xf32> to vector<16x64xf32>
    %75 = arith.mulf %73, %74 : vector<16x64xf32>
    %76 = vector.broadcast %4 : vector<1x64xf32> to vector<16x64xf32>
    %77 = arith.mulf %75, %76 : vector<16x64xf32>
    %78 = vector.broadcast %5 : vector<1x64xf32> to vector<16x64xf32>
    %79 = arith.addf %77, %78 : vector<16x64xf32>
    %80 = arith.truncf %79 : vector<16x64xf32> to vector<16x64xbf16>
    %c0_19 = arith.constant 0 : index
    %c0_20 = arith.constant 0 : index
    %81 = vector.load %arg4[%c0_19, %c0_20] : memref<64x256xbf16, #tpu.memory_space<vmem>>, vector<64x256xbf16>
    %cst_21 = arith.constant dense<0.000000e+00> : vector<16x256xf32>
    %82 = tpu.matmul %80, %81, %cst_21 {dimension_numbers = #tpu.dot_dimension_numbers<[1], [0], [0], [1], [0, 0, 1, 1], [], []>} : vector<16x64xbf16>, vector<64x256xbf16>, vector<16x256xf32> -> vector<16x256xf32>
    %83 = vector.broadcast %2 : vector<1x256xf32> to vector<16x256xf32>
    %84 = arith.addf %82, %83 : vector<16x256xf32>
    %85 = arith.negf %84 : vector<16x256xf32>
    %86 = math.exp %85 : vector<16x256xf32>
    %cst_22 = arith.constant 1.000000e+00 : f32
    %87 = vector.broadcast %cst_22 : f32 to vector<16x256xf32>
    %88 = arith.addf %87, %86 : vector<16x256xf32>
    %89 = arith.divf %87, %88 : vector<16x256xf32>
    %90 = arith.mulf %84, %89 : vector<16x256xf32>
    %91 = arith.truncf %90 : vector<16x256xf32> to vector<16x256xbf16>
    %c0_23 = arith.constant 0 : index
    %c0_24 = arith.constant 0 : index
    %92 = vector.load %arg5[%c0_23, %c0_24] : memref<256x64xbf16, #tpu.memory_space<vmem>>, vector<256x64xbf16>
    %cst_25 = arith.constant dense<0.000000e+00> : vector<16x64xf32>
    %93 = tpu.matmul %91, %92, %cst_25 {dimension_numbers = #tpu.dot_dimension_numbers<[1], [0], [0], [1], [0, 0, 1, 1], [], []>} : vector<16x256xbf16>, vector<256x64xbf16>, vector<16x64xf32> -> vector<16x64xf32>
    %94 = vector.broadcast %6 : vector<1x64xf32> to vector<16x64xf32>
    %95 = arith.addf %93, %94 : vector<16x64xf32>
    %96 = arith.addf %95, %79 : vector<16x64xf32>
    %cst_26 = arith.constant dense<0.000000e+00> : vector<16xf32>
    %97 = vector.multi_reduction <add>, %96, %cst_26 [1] : vector<16x64xf32> to vector<16xf32>
    %98 = vector.shape_cast %97 : vector<16xf32> to vector<16x1xf32>
    %cst_27 = arith.constant 6.400000e+01 : f32
    %99 = vector.broadcast %cst_27 : f32 to vector<16x1xf32>
    %100 = arith.divf %98, %99 : vector<16x1xf32>
    %101 = vector.broadcast %100 : vector<16x1xf32> to vector<16x64xf32>
    %102 = arith.subf %96, %101 : vector<16x64xf32>
    %103 = arith.mulf %102, %102 : vector<16x64xf32>
    %cst_28 = arith.constant dense<0.000000e+00> : vector<16xf32>
    %104 = vector.multi_reduction <add>, %103, %cst_28 [1] : vector<16x64xf32> to vector<16xf32>
    %105 = vector.shape_cast %104 : vector<16xf32> to vector<16x1xf32>
    %cst_29 = arith.constant 6.400000e+01 : f32
    %106 = vector.broadcast %cst_29 : f32 to vector<16x1xf32>
    %107 = arith.divf %105, %106 : vector<16x1xf32>
    %cst_30 = arith.constant 9.99999974E-6 : f32
    %108 = vector.broadcast %cst_30 : f32 to vector<16x1xf32>
    %109 = arith.addf %107, %108 : vector<16x1xf32>
    %110 = math.rsqrt %109 : vector<16x1xf32>
    %111 = vector.broadcast %100 : vector<16x1xf32> to vector<16x64xf32>
    %112 = arith.subf %96, %111 : vector<16x64xf32>
    %113 = vector.broadcast %110 : vector<16x1xf32> to vector<16x64xf32>
    %114 = arith.mulf %112, %113 : vector<16x64xf32>
    %115 = vector.broadcast %7 : vector<1x64xf32> to vector<16x64xf32>
    %116 = arith.mulf %114, %115 : vector<16x64xf32>
    %117 = vector.broadcast %8 : vector<1x64xf32> to vector<16x64xf32>
    %118 = arith.addf %116, %117 : vector<16x64xf32>
    %c0_31 = arith.constant 0 : index
    %c0_32 = arith.constant 0 : index
    %119 = vector.load %arg7[%c0_31, %c0_32] : memref<16x64xf32, #tpu.memory_space<vmem>>, vector<16x64xf32>
    tpu.vector_store %arg7[%c0_31, %c0_32], %118 {strides = array<i32>} : memref<16x64xf32, #tpu.memory_space<vmem>>, vector<16x64xf32>,
    return
  }
  func.func @transform_0(%arg0: i32) -> (i32, i32) {
    %c0_i32 = arith.constant 0 : i32
    %c0_i32_0 = arith.constant 0 : i32
    return %arg0, %c0_i32 : i32, i32
  }
  func.func @transform_1(%arg0: i32) -> (i32, i32) {
    %c0_i32 = arith.constant 0 : i32
    %c0_i32_0 = arith.constant 0 : i32
    %c0_i32_1 = arith.constant 0 : i32
    return %c0_i32, %c0_i32_0 : i32, i32
  }
  func.func @transform_2(%arg0: i32) -> (i32, i32, i32) {
    %c0_i32 = arith.constant 0 : i32
    %c0_i32_0 = arith.constant 0 : i32
    %c0_i32_1 = arith.constant 0 : i32
    %c0_i32_2 = arith.constant 0 : i32
    return %c0_i32, %c0_i32_0, %c0_i32_1 : i32, i32, i32
  }
  func.func @transform_3(%arg0: i32) -> (i32, i32) {
    %c0_i32 = arith.constant 0 : i32
    %c0_i32_0 = arith.constant 0 : i32
    %c0_i32_1 = arith.constant 0 : i32
    return %c0_i32, %c0_i32_0 : i32, i32
  }
  func.func @transform_4(%arg0: i32) -> (i32, i32) {
    %c0_i32 = arith.constant 0 : i32
    %c0_i32_0 = arith.constant 0 : i32
    %c0_i32_1 = arith.constant 0 : i32
    return %c0_i32, %c0_i32_0 : i32, i32
  }
  func.func @transform_5(%arg0: i32) -> (i32, i32) {
    %c0_i32 = arith.constant 0 : i32
    %c0_i32_0 = arith.constant 0 : i32
    %c0_i32_1 = arith.constant 0 : i32
    return %c0_i32, %c0_i32_0 : i32, i32
  }
  func.func @transform_6(%arg0: i32) -> (i32, i32) {
    %c0_i32 = arith.constant 0 : i32
    %c0_i32_0 = arith.constant 0 : i32
    return %arg0, %c0_i32 : i32, i32
  }
}

</mosaic_0001>

<llo_original>
// kernel: tpu_custom_call.1
$region0: #{tpu_custom_call.1}
  #allocation0 [shape = 'u32[]', space=smem, size = 0x4, offset = 0x4, fixed_abs, tag = 'smem constant byte address 0x4 - core index']
  #allocation1 [shape = 'u32[144,128]{1,0:T(1,128)}', space=vmem, size = 0x12000, scoped, tag = 'internal scratch']
  %s0 = inlined_call_operand.hbm [shape: bf16[16,192], index: 0, kind: input, shape index: {}]
  %s1 = inlined_call_operand.vmem [shape: bf16[192,192], index: 1, kind: input, shape index: {}]
  %s2 = inlined_call_operand.hbm [shape: bf16[8,8,64], index: 2, kind: input, shape index: {}]
  %s3 = inlined_call_operand.hbm [shape: bf16[64,256], index: 3, kind: input, shape index: {}]
  %s4 = inlined_call_operand.vmem [shape: bf16[256,64], index: 4, kind: input, shape index: {}]
  %s5 = inlined_call_operand.hbm [shape: f32[8,256], index: 5, kind: input, shape index: {}]
  %s6 = inlined_call_operand.hbm [shape: f32[16,64], index: 6, kind: output, shape index: {}]
  %s7 = sld [smem:[#allocation0]]
  $region50: #{tpu_custom_call.1} parent=0
    _
  %s9 = ssub.s32 1, %s7
  %s10 = scalar_select 0, %s9, %s7
  $region1: #{tpu_custom_call.1} parent=0
    #allocation2 [shape = 'u8[8192]{0}', space=vmem, size = 0x2000, scoped, tag = 'input window, operand 0, single buffered']
    #allocation3 [shape = 's32[1]{0}', space=sflag, size = 0x4, scoped, tag = 'scoped memory for tpu_custom_call.1']
    #allocation4 [shape = 's32[1]{0}', space=sflag, size = 0x4, scoped, tag = 'scoped memory for tpu_custom_call.1']
    #allocation5 [shape = 'u8[16384]{0}', space=vmem, size = 0x4000, scoped, tag = 'input window, operand 2, single buffered']
    #allocation6 [shape = 's32[1]{0}', space=sflag, size = 0x4, scoped, tag = 'scoped memory for tpu_custom_call.1']
    #allocation7 [shape = 'u8[32768]{0}', space=vmem, size = 0x8000, scoped, tag = 'input window, operand 3, single buffered']
    #allocation8 [shape = 'u8[8192]{0}', space=vmem, size = 0x2000, scoped, tag = 'input window, operand 5, single buffered']
    #allocation9 [shape = 's32[1]{0}', space=sflag, size = 0x4, scoped, tag = 'scoped memory for tpu_custom_call.1']
    #allocation10 [shape = 'u8[8192]{0}', space=vmem, size = 0x2000, scoped, tag = 'output window, operand 0, single buffered']
    %11 = vsyncpa [#allocation3], 0
    %12 = vsyncpa [#allocation6], 0
    %13 = vsyncpa [#allocation9], 0
    %14 = vsyncpa [#allocation4], 0
    // Predicated region
    $region2: #{tpu_custom_call.1} parent=1 // pred_check
      _
    $region3: #{tpu_custom_call.1} parent=1 // pred_check_branch
      %16 = sbr.rel (0) target = $region5
    $region4: #{tpu_custom_call.1} parent=1 // pred_region
      %s18 = ssub.s32 256, 256
      %19 = vsyncadd [#allocation3], %s18
      %s20 = sshll.u32 [#allocation2], 4
      %s21 = int_to_ptr.vmem [resolvable:$true] %s20
      %26 = dma.hbm_to_vmem [thread:$0]  %s0, 256, %s21, [#allocation3], 128, 128, 8
    $region5: #{tpu_custom_call.1} parent=1 // pred_fallthru
      _
    // Predicated region
    $region6: #{tpu_custom_call.1} parent=1 // pred_check
      _
    $region7: #{tpu_custom_call.1} parent=1 // pred_check_branch
      %28 = sbr.rel (0) target = $region9
    $region8: #{tpu_custom_call.1} parent=1 // pred_region
      _
    $region9: #{tpu_custom_call.1} parent=1 // pred_fallthru
      _
    // Predicated region
    $region10: #{tpu_custom_call.1} parent=1 // pred_check
      _
    $region11: #{tpu_custom_call.1} parent=1 // pred_check_branch
      %30 = sbr.rel (0) target = $region13
    $region12: #{tpu_custom_call.1} parent=1 // pred_region
      %s32 = ssub.s32 512, 512
      %33 = vsyncadd [#allocation6], %s32
      %s34 = sshll.u32 [#allocation5], 4
      %s35 = int_to_ptr.vmem [resolvable:$true] %s34
      %40 = dma.hbm_to_vmem [thread:$0]  %s2, 512, %s35, [#allocation6], 64, 64, 4
    $region13: #{tpu_custom_call.1} parent=1 // pred_fallthru
      _
    // Predicated region
    $region14: #{tpu_custom_call.1} parent=1 // pred_check
      _
    $region15: #{tpu_custom_call.1} parent=1 // pred_check_branch
      %42 = sbr.rel (0) target = $region17
    $region16: #{tpu_custom_call.1} parent=1 // pred_region
      %s44 = ssub.s32 1024, 1024
      %45 = vsyncadd [#allocation6], %s44
      %s46 = sshll.u32 [#allocation7], 4
      %s47 = int_to_ptr.vmem [resolvable:$true] %s46
      %52 = dma.hbm_to_vmem [thread:$0]  %s3, 1024, %s47, [#allocation6], 128, 128, 8
    $region17: #{tpu_custom_call.1} parent=1 // pred_fallthru
      _
    // Predicated region
    $region18: #{tpu_custom_call.1} parent=1 // pred_check
      _
    $region19: #{tpu_custom_call.1} parent=1 // pred_check_branch
      %54 = sbr.rel (0) target = $region21
    $region20: #{tpu_custom_call.1} parent=1 // pred_region
      _
    $region21: #{tpu_custom_call.1} parent=1 // pred_fallthru
      _
    // Predicated region
    $region22: #{tpu_custom_call.1} parent=1 // pred_check
      _
    $region23: #{tpu_custom_call.1} parent=1 // pred_check_branch
      %56 = sbr.rel (0) target = $region25
    $region24: #{tpu_custom_call.1} parent=1 // pred_region
      %s58 = ssub.s32 256, 256
      %59 = vsyncadd [#allocation9], %s58
      %s61 = sshll.u32 [#allocation8], 4
      %s62 = int_to_ptr.vmem [resolvable:$true] %s61
      %64 = dma.hbm_to_vmem [thread:$0]  %s5, 256, %s62, [#allocation9]
    $region25: #{tpu_custom_call.1} parent=1 // pred_fallthru
      _
    // Predicated region
    $region26: #{tpu_custom_call.1} parent=1 // pred_check
      _
    $region27: #{tpu_custom_call.1} parent=1 // pred_check_branch
      %66 = sbr.rel (0) target = $region29
    $region28: #{tpu_custom_call.1} parent=1 // pred_region
      %67 = dma.done [#allocation3], 256
    $region29: #{tpu_custom_call.1} parent=1 // pred_fallthru
      _
    // Predicated region
    $region30: #{tpu_custom_call.1} parent=1 // pred_check
      _
    $region31: #{tpu_custom_call.1} parent=1 // pred_check_branch
      %69 = sbr.rel (0) target = $region33
    $region32: #{tpu_custom_call.1} parent=1 // pred_region
      %70 = dma.done [#allocation6], 512
    $region33: #{tpu_custom_call.1} parent=1 // pred_fallthru
      _
    // Predicated region
    $region34: #{tpu_custom_call.1} parent=1 // pred_check
      _
    $region35: #{tpu_custom_call.1} parent=1 // pred_check_branch
      %72 = sbr.rel (0) target = $region37
    $region36: #{tpu_custom_call.1} parent=1 // pred_region
      %73 = dma.done [#allocation6], 1024
    $region37: #{tpu_custom_call.1} parent=1 // pred_fallthru
      _
    // Predicated region
    $region38: #{tpu_custom_call.1} parent=1 // pred_check
      _
    $region39: #{tpu_custom_call.1} parent=1 // pred_check_branch
      %75 = sbr.rel (0) target = $region41
    $region40: #{tpu_custom_call.1} parent=1 // pred_region
      %76 = dma.done [#allocation9], 256
    $region41: #{tpu_custom_call.1} parent=1 // pred_fallthru
      _
    %v78 = vld [vmem:[#allocation2] sm:$0xff]
    %v79 = vld [vmem:[#allocation2 + $0x8] sm:$0xff]
    %v80 = vld [vmem:[#allocation8] sm:$0xff]
    %v81 = vld [vmem:[#allocation8 + $0x8] sm:$0xff]
    %v82 = vld [vmem:[%s1] sm:$0xff]
    %v83 = vld [vmem:[%s1 + $0x8] sm:$0xff]
    %v84 = vld [vmem:[%s1 + $0x10] sm:$0xff]
    %v85 = vld [vmem:[%s1 + $0x18] sm:$0xff]
    %v86 = vld [vmem:[%s1 + $0x20] sm:$0xff]
    %v87 = vld [vmem:[%s1 + $0x28] sm:$0xff]
    %v88 = vld [vmem:[%s1 + $0x30] sm:$0xff]
    %v89 = vld [vmem:[%s1 + $0x38] sm:$0xff]
    %v90 = vld [vmem:[%s1 + $0x40] sm:$0xff]
    %v91 = vld [vmem:[%s1 + $0x48] sm:$0xff]
    %v92 = vld [vmem:[%s1 + $0x50] sm:$0xff]
    %v93 = vld [vmem:[%s1 + $0x58] sm:$0xff]
    %v94 = vld [vmem:[%s1 + $0x60] sm:$0xff]
    %v95 = vld [vmem:[%s1 + $0x68] sm:$0xff]
    %v96 = vld [vmem:[%s1 + $0x70] sm:$0xff]
    %v97 = vld [vmem:[%s1 + $0x78] sm:$0xff]
    %v98 = vld [vmem:[%s1 + $0x80] sm:$0xff]
    %v99 = vld [vmem:[%s1 + $0x88] sm:$0xff]
    %v100 = vld [vmem:[%s1 + $0x90] sm:$0xff]
    %v101 = vld [vmem:[%s1 + $0x98] sm:$0xff]
    %v102 = vld [vmem:[%s1 + $0xa0] sm:$0xff]
    %v103 = vld [vmem:[%s1 + $0xa8] sm:$0xff]
    %v104 = vld [vmem:[%s1 + $0xb0] sm:$0xff]
    %v105 = vld [vmem:[%s1 + $0xb8] sm:$0xff]
    %v108 = vunpack.c.l.b16 %v78
    %v109 = vunpack.c.h.b16 %v78
    %v110 = vunpack.c.l.b16 %v79
    %v111 = vunpack.c.h.b16 %v79
    %v112 = vpack.c.b16 %v110, %v108
    %v113 = vpack.c.b16 %v111, %v109
    %v139 = vunpack.c.l.b16 %v82
    %v140 = vunpack.c.h.b16 %v82
    %v141 = vunpack.c.l.b16 %v83
    %v142 = vunpack.c.h.b16 %v83
    %v143 = vunpack.c.l.b16 %v84
    %v144 = vunpack.c.h.b16 %v84
    %v145 = vunpack.c.l.b16 %v85
    %v146 = vunpack.c.h.b16 %v85
    %v147 = vunpack.c.l.b16 %v86
    %v148 = vunpack.c.h.b16 %v86
    %v149 = vunpack.c.l.b16 %v87
    %v150 = vunpack.c.h.b16 %v87
    %v151 = vunpack.c.l.b16 %v88
    %v152 = vunpack.c.h.b16 %v88
    %v153 = vunpack.c.l.b16 %v89
    %v154 = vunpack.c.h.b16 %v89
    %v155 = vunpack.c.l.b16 %v90
    %v156 = vunpack.c.h.b16 %v90
    %v157 = vunpack.c.l.b16 %v91
    %v158 = vunpack.c.h.b16 %v91
    %v159 = vunpack.c.l.b16 %v92
    %v160 = vunpack.c.h.b16 %v92
    %v161 = vunpack.c.l.b16 %v93
    %v162 = vunpack.c.h.b16 %v93
    %v163 = vunpack.c.l.b16 %v94
    %v164 = vunpack.c.h.b16 %v94
    %v165 = vunpack.c.l.b16 %v95
    %v166 = vunpack.c.h.b16 %v95
    %v167 = vunpack.c.l.b16 %v96
    %v168 = vunpack.c.h.b16 %v96
    %v169 = vunpack.c.l.b16 %v97
    %v170 = vunpack.c.h.b16 %v97
    %v171 = vunpack.c.l.b16 %v98
    %v172 = vunpack.c.h.b16 %v98
    %v173 = vunpack.c.l.b16 %v99
    %v174 = vunpack.c.h.b16 %v99
    %v175 = vunpack.c.l.b16 %v100
    %v176 = vunpack.c.h.b16 %v100
    %v177 = vunpack.c.l.b16 %v101
    %v178 = vunpack.c.h.b16 %v101
    %v179 = vunpack.c.l.b16 %v102
    %v180 = vunpack.c.h.b16 %v102
    %v181 = vunpack.c.l.b16 %v103
    %v182 = vunpack.c.h.b16 %v103
    %v183 = vunpack.c.l.b16 %v104
    %v184 = vunpack.c.h.b16 %v104
    %v185 = vunpack.c.l.b16 %v105
    %v186 = vunpack.c.h.b16 %v105
    %v187 = vpack.c.b16 %v141, %v139
    %v188 = vpack.c.b16 %v142, %v140
    %v189 = vpack.c.b16 %v145, %v143
    %v190 = vpack.c.b16 %v146, %v144
    %v191 = vpack.c.b16 %v149, %v147
    %v192 = vpack.c.b16 %v150, %v148
    %v193 = vpack.c.b16 %v153, %v151
    %v194 = vpack.c.b16 %v154, %v152
    %v195 = vpack.c.b16 %v157, %v155
    %v196 = vpack.c.b16 %v158, %v156
    %v197 = vpack.c.b16 %v161, %v159
    %v198 = vpack.c.b16 %v162, %v160
    %v199 = vpack.c.b16 %v165, %v163
    %v200 = vpack.c.b16 %v166, %v164
    %v201 = vpack.c.b16 %v169, %v167
    %v202 = vpack.c.b16 %v170, %v168
    %v203 = vpack.c.b16 %v173, %v171
    %v204 = vpack.c.b16 %v174, %v172
    %v205 = vpack.c.b16 %v177, %v175
    %v206 = vpack.c.b16 %v178, %v176
    %v207 = vpack.c.b16 %v181, %v179
    %v208 = vpack.c.b16 %v182, %v180
    %v209 = vpack.c.b16 %v185, %v183
    %v210 = vpack.c.b16 %v186, %v184
    %vm235 = vcmask 523264
    %v237 = vsel %vm235, %v113, 0
    %239 = vmatprep.subr.bf16.mxu0 %v202
    %240 = vmatpush1.bf16.msra.mxu0 %v201
    %241 = vmatprep.subr.bf16.mxu0 %v200
    %242 = vmatpush1.bf16.msra.mxu0 %v199
    %243 = vmatprep.subr.bf16.mxu0 %v198
    %244 = vmatpush1.bf16.msra.mxu0 %v197
    %245 = vmatprep.subr.bf16.mxu0 %v196
    %246 = vmatpush1.bf16.msra.mxu0 %v195
    %247 = vmatprep.subr.bf16.mxu0 %v194
    %248 = vmatpush1.bf16.msra.mxu0 %v193
    %249 = vmatprep.subr.bf16.mxu0 %v192
    %250 = vmatpush1.bf16.msra.mxu0 %v191
    %251 = vmatprep.subr.bf16.mxu0 %v190
    %252 = vmatpush1.bf16.msra.mxu0 %v189
    %253 = vmatprep.subr.bf16.mxu0 %v188
    %254 = vmatpush1.bf16.msra.mxu0 %v187
    %255 = vmatprep.subr.bf16.mxu0 0
    %256 = vmatpush2.bf16.msra.mxu0 0
    %257 = vmatprep.subr.bf16.mxu0 0
    %258 = vmatpush2.bf16.msra.mxu0 0
    %259 = vmatprep.subr.bf16.mxu0 0
    %260 = vmatpush2.bf16.msra.mxu0 0
    %261 = vmatprep.subr.bf16.mxu0 0
    %262 = vmatpush2.bf16.msra.mxu0 0
    %263 = vmatprep.subr.bf16.mxu0 %v210
    %264 = vmatpush2.bf16.msra.mxu0 %v209
    %265 = vmatprep.subr.bf16.mxu0 %v208
    %266 = vmatpush2.bf16.msra.mxu0 %v207
    %267 = vmatprep.subr.bf16.mxu0 %v206
    %268 = vmatpush2.bf16.msra.mxu0 %v205
    %269 = vmatprep.subr.bf16.mxu0 %v204
    %270 = vmatpush2.bf16.msra.mxu0 %v203
    %271 = vmatprep.mubr.bf16.mxu0 %v237
    %272 = vmatmul.mubr.bf16.gmra.mxu0 %v112
    %v273 = vpop.f32.mrf.mxu0
    %v274 = vadd.f32 0.0, %v273
    %v275 = vpop.f32.mrf.mxu0
    %v276 = vadd.f32 0.0, %v275
    %v277 = vpop.f32.mrf.mxu0
    %v278 = vadd.f32 0.0, %v277
    %v279 = vpop.f32.mrf.mxu0
    %v280 = vadd.f32 0.0, %v279
    %281 = vdwg.mxu0
    %284 = vrot.lane.b32.xlu0 %v274, 104
    %v285 = vpop.permute.xlu0 %284
    %286 = vrot.lane.b32.xlu0 %v278, 104
    %v287 = vpop.permute.xlu0 %286
    %290 = vrot.lane.b32.xlu0 %v274, 80
    %v291 = vpop.permute.xlu0 %290
    %292 = vrot.lane.b32.xlu0 %v278, 80
    %v293 = vpop.permute.xlu0 %292
    %296 = vrot.lane.b32.xlu0 %v274, 56
    %v297 = vpop.permute.xlu0 %296
    %298 = vrot.lane.b32.xlu0 %v278, 56
    %v299 = vpop.permute.xlu0 %298
    %302 = vrot.lane.b32.xlu0 %v274, 32
    %v303 = vpop.permute.xlu0 %302
    %304 = vrot.lane.b32.xlu0 %v278, 32
    %v305 = vpop.permute.xlu0 %304
    %310 = vrot.lane.b32.xlu0 %v274, 8
    %v311 = vpop.permute.xlu0 %310
    %312 = vrot.lane.b32.xlu0 %v276, 8
    %v313 = vpop.permute.xlu0 %312
    %314 = vrot.lane.b32.xlu0 %v278, 8
    %v315 = vpop.permute.xlu0 %314
    %316 = vrot.lane.b32.xlu0 %v280, 8
    %v317 = vpop.permute.xlu0 %316
    %vm318 = vcmask 64512
    %v319 = vsel %vm318, %v311, %v313
    %v320 = vsel %vm318, %v315, %v317
    %323 = vrot.lane.b32.xlu0 %v276, 112
    %v324 = vpop.permute.xlu0 %323
    %325 = vrot.lane.b32.xlu0 %v280, 112
    %v326 = vpop.permute.xlu0 %325
    %329 = vrot.lane.b32.xlu0 %v276, 88
    %v330 = vpop.permute.xlu0 %329
    %331 = vrot.lane.b32.xlu0 %v280, 88
    %v332 = vpop.permute.xlu0 %331
    %v335 = vpack.c.bf16 %v274, %v274
    %v336 = vpack.c.bf16 %v278, %v278
    %v337 = vpack.c.bf16 %v285, %v285
    %v338 = vpack.c.bf16 %v287, %v287
    %v339 = vpack.c.bf16 %v291, %v291
    %v340 = vpack.c.bf16 %v293, %v293
    %v341 = vpack.c.bf16 %v297, %v297
    %v342 = vpack.c.bf16 %v299, %v299
    %v343 = vpack.c.bf16 %v303, %v303
    %v344 = vpack.c.bf16 %v305, %v305
    %v345 = vpack.c.bf16 %v319, %v319
    %v346 = vpack.c.bf16 %v320, %v320
    %v347 = vpack.c.bf16 %v324, %v324
    %v348 = vpack.c.bf16 %v326, %v326
    %v349 = vpack.c.bf16 %v330, %v330
    %v350 = vpack.c.bf16 %v332, %v332
    %352 = vrot.lane.b32.xlu0 %v335, 120
    %v353 = vpop.permute.xlu0 %352
    %v355 = vsel %vm318, %v335, 0
    %v358 = vsel %vm318, %v353, 0
    %360 = vmatprep.subr.bf16.mxu0 0
    %361 = vmatpush1.bf16.xpose.msra.mxu0 0
    %362 = vmatprep.subr.bf16.mxu0 0
    %363 = vmatpush1.bf16.xpose.msra.mxu0 0
    %364 = vmatprep.subr.bf16.mxu0 0
    %365 = vmatpush1.bf16.xpose.msra.mxu0 0
    %366 = vmatprep.subr.bf16.mxu0 0
    %367 = vmatpush1.bf16.xpose.msra.mxu0 0
    %368 = vmatprep.subr.bf16.mxu0 0
    %369 = vmatpush1.bf16.xpose.msra.mxu0 0
    %370 = vmatprep.subr.bf16.mxu0 0
    %371 = vmatpush1.bf16.xpose.msra.mxu0 0
    %372 = vmatprep.subr.bf16.mxu0 0
    %373 = vmatpush1.bf16.xpose.msra.mxu0 0
    %374 = vmatprep.subr.bf16.mxu0 0
    %375 = vmatpush1.bf16.xpose.msra.mxu0 %v358
    %376 = vmatprep.subr.bf16.mxu0 0
    %377 = vmatpush2.bf16.xpose.msra.mxu0 0
    %378 = vmatprep.subr.bf16.mxu0 0
    %379 = vmatpush2.bf16.xpose.msra.mxu0 0
    %380 = vmatprep.subr.bf16.mxu0 0
    %381 = vmatpush2.bf16.xpose.msra.mxu0 0
    %382 = vmatprep.subr.bf16.mxu0 0
    %383 = vmatpush2.bf16.xpose.msra.mxu0 0
    %384 = vmatprep.subr.bf16.mxu0 0
    %385 = vmatpush2.bf16.xpose.msra.mxu0 0
    %386 = vmatprep.subr.bf16.mxu0 0
    %387 = vmatpush2.bf16.xpose.msra.mxu0 0
    %388 = vmatprep.subr.bf16.mxu0 0
    %389 = vmatpush2.bf16.xpose.msra.mxu0 0
    %390 = vmatprep.subr.bf16.mxu0 0
    %391 = vmatpush2.bf16.xpose.msra.mxu0 0
    %392 = vmatprep.mubr.bf16.mxu0 0
    %393 = vmatmul.mubr.bf16.gmra.mxu0 %v355
    %v394 = vpop.f32.mrf.mxu0
    %v395 = vadd.f32 0.0, %v394
    %v396 = vpop.f32.mrf.mxu0
    %v397 = vpop.f32.mrf.mxu0
    %v398 = vpop.f32.mrf.mxu0
    %399 = vdwg.mxu0
    %401 = vrot.lane.b32.xlu0 %v336, 120
    %v402 = vpop.permute.xlu0 %401
    %v404 = vsel %vm318, %v336, 0
    %v407 = vsel %vm318, %v402, 0
    %409 = vmatprep.subr.bf16.mxu0 0
    %410 = vmatpush1.bf16.xpose.msra.mxu0 0
    %411 = vmatprep.subr.bf16.mxu0 0
    %412 = vmatpush1.bf16.xpose.msra.mxu0 0
    %413 = vmatprep.subr.bf16.mxu0 0
    %414 = vmatpush1.bf16.xpose.msra.mxu0 0
    %415 = vmatprep.subr.bf16.mxu0 0
    %416 = vmatpush1.bf16.xpose.msra.mxu0 0
    %417 = vmatprep.subr.bf16.mxu0 0
    %418 = vmatpush1.bf16.xpose.msra.mxu0 0
    %419 = vmatprep.subr.bf16.mxu0 0
    %420 = vmatpush1.bf16.xpose.msra.mxu0 0
    %421 = vmatprep.subr.bf16.mxu0 0
    %422 = vmatpush1.bf16.xpose.msra.mxu0 0
    %423 = vmatprep.subr.bf16.mxu0 0
    %424 = vmatpush1.bf16.xpose.msra.mxu0 %v407
    %425 = vmatprep.subr.bf16.mxu0 0
    %426 = vmatpush2.bf16.xpose.msra.mxu0 0
    %427 = vmatprep.subr.bf16.mxu0 0
    %428 = vmatpush2.bf16.xpose.msra.mxu0 0
    %429 = vmatprep.subr.bf16.mxu0 0
    %430 = vmatpush2.bf16.xpose.msra.mxu0 0
    %431 = vmatprep.subr.bf16.mxu0 0
    %432 = vmatpush2.bf16.xpose.msra.mxu0 0
    %433 = vmatprep.subr.bf16.mxu0 0
    %434 = vmatpush2.bf16.xpose.msra.mxu0 0
    %435 = vmatprep.subr.bf16.mxu0 0
    %436 = vmatpush2.bf16.xpose.msra.mxu0 0
    %437 = vmatprep.subr.bf16.mxu0 0
    %438 = vmatpush2.bf16.xpose.msra.mxu0 0
    %439 = vmatprep.subr.bf16.mxu0 0
    %440 = vmatpush2.bf16.xpose.msra.mxu0 0
    %441 = vmatprep.mubr.bf16.mxu0 0
    %442 = vmatmul.mubr.bf16.gmra.mxu0 %v404
    %v443 = vpop.f32.mrf.mxu0
    %v444 = vadd.f32 0.0, %v443
    %v445 = vpop.f32.mrf.mxu0
    %v446 = vpop.f32.mrf.mxu0
    %v447 = vpop.f32.mrf.mxu0
    %448 = vdwg.mxu0
    %450 = vrot.lane.b32.xlu0 %v337, 120
    %v451 = vpop.permute.xlu0 %450
    %v453 = vsel %vm318, %v337, 0
    %v456 = vsel %vm318, %v451, 0
    %458 = vmatprep.subr.bf16.mxu0 0
    %459 = vmatpush1.bf16.xpose.msra.mxu0 0
    %460 = vmatprep.subr.bf16.mxu0 0
    %461 = vmatpush1.bf16.xpose.msra.mxu0 0
    %462 = vmatprep.subr.bf16.mxu0 0
    %463 = vmatpush1.bf16.xpose.msra.mxu0 0
    %464 = vmatprep.subr.bf16.mxu0 0
    %465 = vmatpush1.bf16.xpose.msra.mxu0 0
    %466 = vmatprep.subr.bf16.mxu0 0
    %467 = vmatpush1.bf16.xpose.msra.mxu0 0
    %468 = vmatprep.subr.bf16.mxu0 0
    %469 = vmatpush1.bf16.xpose.msra.mxu0 0
    %470 = vmatprep.subr.bf16.mxu0 0
    %471 = vmatpush1.bf16.xpose.msra.mxu0 0
    %472 = vmatprep.subr.bf16.mxu0 0
    %473 = vmatpush1.bf16.xpose.msra.mxu0 %v456
    %474 = vmatprep.subr.bf16.mxu0 0
    %475 = vmatpush2.bf16.xpose.msra.mxu0 0
    %476 = vmatprep.subr.bf16.mxu0 0
    %477 = vmatpush2.bf16.xpose.msra.mxu0 0
    %478 = vmatprep.subr.bf16.mxu0 0
    %479 = vmatpush2.bf16.xpose.msra.mxu0 0
    %480 = vmatprep.subr.bf16.mxu0 0
    %481 = vmatpush2.bf16.xpose.msra.mxu0 0
    %482 = vmatprep.subr.bf16.mxu0 0
    %483 = vmatpush2.bf16.xpose.msra.mxu0 0
    %484 = vmatprep.subr.bf16.mxu0 0
    %485 = vmatpush2.bf16.xpose.msra.mxu0 0
    %486 = vmatprep.subr.bf16.mxu0 0
    %487 = vmatpush2.bf16.xpose.msra.mxu0 0
    %488 = vmatprep.subr.bf16.mxu0 0
    %489 = vmatpush2.bf16.xpose.msra.mxu0 0
    %490 = vmatprep.mubr.bf16.mxu0 0
    %491 = vmatmul.mubr.bf16.gmra.mxu0 %v453
    %v492 = vpop.f32.mrf.mxu0
    %v493 = vadd.f32 0.0, %v492
    %v494 = vpop.f32.mrf.mxu0
    %v495 = vpop.f32.mrf.mxu0
    %v496 = vpop.f32.mrf.mxu0
    %497 = vdwg.mxu0
    %499 = vrot.lane.b32.xlu0 %v338, 120
    %v500 = vpop.permute.xlu0 %499
    %v502 = vsel %vm318, %v338, 0
    %v505 = vsel %vm318, %v500, 0
    %507 = vmatprep.subr.bf16.mxu0 0
    %508 = vmatpush1.bf16.xpose.msra.mxu0 0
    %509 = vmatprep.subr.bf16.mxu0 0
    %510 = vmatpush1.bf16.xpose.msra.mxu0 0
    %511 = vmatprep.subr.bf16.mxu0 0
    %512 = vmatpush1.bf16.xpose.msra.mxu0 0
    %513 = vmatprep.subr.bf16.mxu0 0
    %514 = vmatpush1.bf16.xpose.msra.mxu0 0
    %515 = vmatprep.subr.bf16.mxu0 0
    %516 = vmatpush1.bf16.xpose.msra.mxu0 0
    %517 = vmatprep.subr.bf16.mxu0 0
    %518 = vmatpush1.bf16.xpose.msra.mxu0 0
    %519 = vmatprep.subr.bf16.mxu0 0
    %520 = vmatpush1.bf16.xpose.msra.mxu0 0
    %521 = vmatprep.subr.bf16.mxu0 0
    %522 = vmatpush1.bf16.xpose.msra.mxu0 %v505
    %523 = vmatprep.subr.bf16.mxu0 0
    %524 = vmatpush2.bf16.xpose.msra.mxu0 0
    %525 = vmatprep.subr.bf16.mxu0 0
    %526 = vmatpush2.bf16.xpose.msra.mxu0 0
    %527 = vmatprep.subr.bf16.mxu0 0
    %528 = vmatpush2.bf16.xpose.msra.mxu0 0
    %529 = vmatprep.subr.bf16.mxu0 0
    %530 = vmatpush2.bf16.xpose.msra.mxu0 0
    %531 = vmatprep.subr.bf16.mxu0 0
    %532 = vmatpush2.bf16.xpose.msra.mxu0 0
    %533 = vmatprep.subr.bf16.mxu0 0
    %534 = vmatpush2.bf16.xpose.msra.mxu0 0
    %535 = vmatprep.subr.bf16.mxu0 0
    %536 = vmatpush2.bf16.xpose.msra.mxu0 0
    %537 = vmatprep.subr.bf16.mxu0 0
    %538 = vmatpush2.bf16.xpose.msra.mxu0 0
    %539 = vmatprep.mubr.bf16.mxu0 0
    %540 = vmatmul.mubr.bf16.gmra.mxu0 %v502
    %v541 = vpop.f32.mrf.mxu0
    %v542 = vadd.f32 0.0, %v541
    %v543 = vpop.f32.mrf.mxu0
    %v544 = vpop.f32.mrf.mxu0
    %v545 = vpop.f32.mrf.mxu0
    %546 = vdwg.mxu0
    %548 = vrot.lane.b32.xlu0 %v339, 120
    %v549 = vpop.permute.xlu0 %548
    %v551 = vsel %vm318, %v339, 0
    %v554 = vsel %vm318, %v549, 0
    %556 = vmatprep.subr.bf16.mxu0 0
    %557 = vmatpush1.bf16.xpose.msra.mxu0 0
    %558 = vmatprep.subr.bf16.mxu0 0
    %559 = vmatpush1.bf16.xpose.msra.mxu0 0
    %560 = vmatprep.subr.bf16.mxu0 0
    %561 = vmatpush1.bf16.xpose.msra.mxu0 0
    %562 = vmatprep.subr.bf16.mxu0 0
    %563 = vmatpush1.bf16.xpose.msra.mxu0 0
    %564 = vmatprep.subr.bf16.mxu0 0
    %565 = vmatpush1.bf16.xpose.msra.mxu0 0
    %566 = vmatprep.subr.bf16.mxu0 0
    %567 = vmatpush1.bf16.xpose.msra.mxu0 0
    %568 = vmatprep.subr.bf16.mxu0 0
    %569 = vmatpush1.bf16.xpose.msra.mxu0 0
    %570 = vmatprep.subr.bf16.mxu0 0
    %571 = vmatpush1.bf16.xpose.msra.mxu0 %v554
    %572 = vmatprep.subr.bf16.mxu0 0
    %573 = vmatpush2.bf16.xpose.msra.mxu0 0
    %574 = vmatprep.subr.bf16.mxu0 0
    %575 = vmatpush2.bf16.xpose.msra.mxu0 0
    %576 = vmatprep.subr.bf16.mxu0 0
    %577 = vmatpush2.bf16.xpose.msra.mxu0 0
    %578 = vmatprep.subr.bf16.mxu0 0
    %579 = vmatpush2.bf16.xpose.msra.mxu0 0
    %580 = vmatprep.subr.bf16.mxu0 0
    %581 = vmatpush2.bf16.xpose.msra.mxu0 0
    %582 = vmatprep.subr.bf16.mxu0 0
    %583 = vmatpush2.bf16.xpose.msra.mxu0 0
    %584 = vmatprep.subr.bf16.mxu0 0
    %585 = vmatpush2.bf16.xpose.msra.mxu0 0
    %586 = vmatprep.subr.bf16.mxu0 0
    %587 = vmatpush2.bf16.xpose.msra.mxu0 0
    %588 = vmatprep.mubr.bf16.mxu0 0
    %589 = vmatmul.mubr.bf16.gmra.mxu0 %v551
    %v590 = vpop.f32.mrf.mxu0
    %v591 = vadd.f32 0.0, %v590
    %v592 = vpop.f32.mrf.mxu0
    %v593 = vpop.f32.mrf.mxu0
    %v594 = vpop.f32.mrf.mxu0
    %595 = vdwg.mxu0
    %597 = vrot.lane.b32.xlu0 %v340, 120
    %v598 = vpop.permute.xlu0 %597
    %v600 = vsel %vm318, %v340, 0
    %v603 = vsel %vm318, %v598, 0
    %605 = vmatprep.subr.bf16.mxu0 0
    %606 = vmatpush1.bf16.xpose.msra.mxu0 0
    %607 = vmatprep.subr.bf16.mxu0 0
    %608 = vmatpush1.bf16.xpose.msra.mxu0 0
    %609 = vmatprep.subr.bf16.mxu0 0
    %610 = vmatpush1.bf16.xpose.msra.mxu0 0
    %611 = vmatprep.subr.bf16.mxu0 0
    %612 = vmatpush1.bf16.xpose.msra.mxu0 0
    %613 = vmatprep.subr.bf16.mxu0 0
    %614 = vmatpush1.bf16.xpose.msra.mxu0 0
    %615 = vmatprep.subr.bf16.mxu0 0
    %616 = vmatpush1.bf16.xpose.msra.mxu0 0
    %617 = vmatprep.subr.bf16.mxu0 0
    %618 = vmatpush1.bf16.xpose.msra.mxu0 0
    %619 = vmatprep.subr.bf16.mxu0 0
    %620 = vmatpush1.bf16.xpose.msra.mxu0 %v603
    %621 = vmatprep.subr.bf16.mxu0 0
    %622 = vmatpush2.bf16.xpose.msra.mxu0 0
    %623 = vmatprep.subr.bf16.mxu0 0
    %624 = vmatpush2.bf16.xpose.msra.mxu0 0
    %625 = vmatprep.subr.bf16.mxu0 0
    %626 = vmatpush2.bf16.xpose.msra.mxu0 0
    %627 = vmatprep.subr.bf16.mxu0 0
    %628 = vmatpush2.bf16.xpose.msra.mxu0 0
    %629 = vmatprep.subr.bf16.mxu0 0
    %630 = vmatpush2.bf16.xpose.msra.mxu0 0
    %631 = vmatprep.subr.bf16.mxu0 0
    %632 = vmatpush2.bf16.xpose.msra.mxu0 0
    %633 = vmatprep.subr.bf16.mxu0 0
    %634 = vmatpush2.bf16.xpose.msra.mxu0 0
    %635 = vmatprep.subr.bf16.mxu0 0
    %636 = vmatpush2.bf16.xpose.msra.mxu0 0
    %637 = vmatprep.mubr.bf16.mxu0 0
    %638 = vmatmul.mubr.bf16.gmra.mxu0 %v600
    %v639 = vpop.f32.mrf.mxu0
    %v640 = vadd.f32 0.0, %v639
    %v641 = vpop.f32.mrf.mxu0
    %v642 = vpop.f32.mrf.mxu0
    %v643 = vpop.f32.mrf.mxu0
    %644 = vdwg.mxu0
    %646 = vrot.lane.b32.xlu0 %v341, 120
    %v647 = vpop.permute.xlu0 %646
    %v649 = vsel %vm318, %v341, 0
    %v652 = vsel %vm318, %v647, 0
    %654 = vmatprep.subr.bf16.mxu0 0
    %655 = vmatpush1.bf16.xpose.msra.mxu0 0
    %656 = vmatprep.subr.bf16.mxu0 0
    %657 = vmatpush1.bf16.xpose.msra.mxu0 0
    %658 = vmatprep.subr.bf16.mxu0 0
    %659 = vmatpush1.bf16.xpose.msra.mxu0 0
    %660 = vmatprep.subr.bf16.mxu0 0
    %661 = vmatpush1.bf16.xpose.msra.mxu0 0
    %662 = vmatprep.subr.bf16.mxu0 0
    %663 = vmatpush1.bf16.xpose.msra.mxu0 0
    %664 = vmatprep.subr.bf16.mxu0 0
    %665 = vmatpush1.bf16.xpose.msra.mxu0 0
    %666 = vmatprep.subr.bf16.mxu0 0
    %667 = vmatpush1.bf16.xpose.msra.mxu0 0
    %668 = vmatprep.subr.bf16.mxu0 0
    %669 = vmatpush1.bf16.xpose.msra.mxu0 %v652
    %670 = vmatprep.subr.bf16.mxu0 0
    %671 = vmatpush2.bf16.xpose.msra.mxu0 0
    %672 = vmatprep.subr.bf16.mxu0 0
    %673 = vmatpush2.bf16.xpose.msra.mxu0 0
    %674 = vmatprep.subr.bf16.mxu0 0
    %675 = vmatpush2.bf16.xpose.msra.mxu0 0
    %676 = vmatprep.subr.bf16.mxu0 0
    %677 = vmatpush2.bf16.xpose.msra.mxu0 0
    %678 = vmatprep.subr.bf16.mxu0 0
    %679 = vmatpush2.bf16.xpose.msra.mxu0 0
    %680 = vmatprep.subr.bf16.mxu0 0
    %681 = vmatpush2.bf16.xpose.msra.mxu0 0
    %682 = vmatprep.subr.bf16.mxu0 0
    %683 = vmatpush2.bf16.xpose.msra.mxu0 0
    %684 = vmatprep.subr.bf16.mxu0 0
    %685 = vmatpush2.bf16.xpose.msra.mxu0 0
    %686 = vmatprep.mubr.bf16.mxu0 0
    %687 = vmatmul.mubr.bf16.gmra.mxu0 %v649
    %v688 = vpop.f32.mrf.mxu0
    %v689 = vadd.f32 0.0, %v688
    %v690 = vpop.f32.mrf.mxu0
    %v691 = vpop.f32.mrf.mxu0
    %v692 = vpop.f32.mrf.mxu0
    %693 = vdwg.mxu0
    %695 = vrot.lane.b32.xlu0 %v342, 120
    %v696 = vpop.permute.xlu0 %695
    %v698 = vsel %vm318, %v342, 0
    %v701 = vsel %vm318, %v696, 0
    %703 = vmatprep.subr.bf16.mxu0 0
    %704 = vmatpush1.bf16.xpose.msra.mxu0 0
    %705 = vmatprep.subr.bf16.mxu0 0
    %706 = vmatpush1.bf16.xpose.msra.mxu0 0
    %707 = vmatprep.subr.bf16.mxu0 0
    %708 = vmatpush1.bf16.xpose.msra.mxu0 0
    %709 = vmatprep.subr.bf16.mxu0 0
    %710 = vmatpush1.bf16.xpose.msra.mxu0 0
    %711 = vmatprep.subr.bf16.mxu0 0
    %712 = vmatpush1.bf16.xpose.msra.mxu0 0
    %713 = vmatprep.subr.bf16.mxu0 0
    %714 = vmatpush1.bf16.xpose.msra.mxu0 0
    %715 = vmatprep.subr.bf16.mxu0 0
    %716 = vmatpush1.bf16.xpose.msra.mxu0 0
    %717 = vmatprep.subr.bf16.mxu0 0
    %718 = vmatpush1.bf16.xpose.msra.mxu0 %v701
    %719 = vmatprep.subr.bf16.mxu0 0
    %720 = vmatpush2.bf16.xpose.msra.mxu0 0
    %721 = vmatprep.subr.bf16.mxu0 0
    %722 = vmatpush2.bf16.xpose.msra.mxu0 0
    %723 = vmatprep.subr.bf16.mxu0 0
    %724 = vmatpush2.bf16.xpose.msra.mxu0 0
    %725 = vmatprep.subr.bf16.mxu0 0
    %726 = vmatpush2.bf16.xpose.msra.mxu0 0
    %727 = vmatprep.subr.bf16.mxu0 0
    %728 = vmatpush2.bf16.xpose.msra.mxu0 0
    %729 = vmatprep.subr.bf16.mxu0 0
    %730 = vmatpush2.bf16.xpose.msra.mxu0 0
    %731 = vmatprep.subr.bf16.mxu0 0
    %732 = vmatpush2.bf16.xpose.msra.mxu0 0
    %733 = vmatprep.subr.bf16.mxu0 0
    %734 = vmatpush2.bf16.xpose.msra.mxu0 0
    %735 = vmatprep.mubr.bf16.mxu0 0
    %736 = vmatmul.mubr.bf16.gmra.mxu0 %v698
    %v737 = vpop.f32.mrf.mxu0
    %v738 = vadd.f32 0.0, %v737
    %v739 = vpop.f32.mrf.mxu0
    %v740 = vpop.f32.mrf.mxu0
    %v741 = vpop.f32.mrf.mxu0
    %742 = vdwg.mxu0
    %744 = vrot.lane.b32.xlu0 %v343, 120
    %v745 = vpop.permute.xlu0 %744
    %v747 = vsel %vm318, %v343, 0
    %v750 = vsel %vm318, %v745, 0
    %752 = vmatprep.subr.bf16.mxu0 0
    %753 = vmatpush1.bf16.xpose.msra.mxu0 0
    %754 = vmatprep.subr.bf16.mxu0 0
    %755 = vmatpush1.bf16.xpose.msra.mxu0 0
    %756 = vmatprep.subr.bf16.mxu0 0
    %757 = vmatpush1.bf16.xpose.msra.mxu0 0
    %758 = vmatprep.subr.bf16.mxu0 0
    %759 = vmatpush1.bf16.xpose.msra.mxu0 0
    %760 = vmatprep.subr.bf16.mxu0 0
    %761 = vmatpush1.bf16.xpose.msra.mxu0 0
    %762 = vmatprep.subr.bf16.mxu0 0
    %763 = vmatpush1.bf16.xpose.msra.mxu0 0
    %764 = vmatprep.subr.bf16.mxu0 0
    %765 = vmatpush1.bf16.xpose.msra.mxu0 0
    %766 = vmatprep.subr.bf16.mxu0 0
    %767 = vmatpush1.bf16.xpose.msra.mxu0 %v750
    %768 = vmatprep.subr.bf16.mxu0 0
    %769 = vmatpush2.bf16.xpose.msra.mxu0 0
    %770 = vmatprep.subr.bf16.mxu0 0
    %771 = vmatpush2.bf16.xpose.msra.mxu0 0
    %772 = vmatprep.subr.bf16.mxu0 0
    %773 = vmatpush2.bf16.xpose.msra.mxu0 0
    %774 = vmatprep.subr.bf16.mxu0 0
    %775 = vmatpush2.bf16.xpose.msra.mxu0 0
    %776 = vmatprep.subr.bf16.mxu0 0
    %777 = vmatpush2.bf16.xpose.msra.mxu0 0
    %778 = vmatprep.subr.bf16.mxu0 0
    %779 = vmatpush2.bf16.xpose.msra.mxu0 0
    %780 = vmatprep.subr.bf16.mxu0 0
    %781 = vmatpush2.bf16.xpose.msra.mxu0 0
    %782 = vmatprep.subr.bf16.mxu0 0
    %783 = vmatpush2.bf16.xpose.msra.mxu0 0
    %784 = vmatprep.mubr.bf16.mxu0 0
    %785 = vmatmul.mubr.bf16.gmra.mxu0 %v747
    %v786 = vpop.f32.mrf.mxu0
    %v787 = vadd.f32 0.0, %v786
    %v788 = vpop.f32.mrf.mxu0
    %v789 = vpop.f32.mrf.mxu0
    %v790 = vpop.f32.mrf.mxu0
    %791 = vdwg.mxu0
    %793 = vrot.lane.b32.xlu0 %v344, 120
    %v794 = vpop.permute.xlu0 %793
    %v796 = vsel %vm318, %v344, 0
    %v799 = vsel %vm318, %v794, 0
    %801 = vmatprep.subr.bf16.mxu0 0
    %802 = vmatpush1.bf16.xpose.msra.mxu0 0
    %803 = vmatprep.subr.bf16.mxu0 0
    %804 = vmatpush1.bf16.xpose.msra.mxu0 0
    %805 = vmatprep.subr.bf16.mxu0 0
    %806 = vmatpush1.bf16.xpose.msra.mxu0 0
    %807 = vmatprep.subr.bf16.mxu0 0
    %808 = vmatpush1.bf16.xpose.msra.mxu0 0
    %809 = vmatprep.subr.bf16.mxu0 0
    %810 = vmatpush1.bf16.xpose.msra.mxu0 0
    %811 = vmatprep.subr.bf16.mxu0 0
    %812 = vmatpush1.bf16.xpose.msra.mxu0 0
    %813 = vmatprep.subr.bf16.mxu0 0
    %814 = vmatpush1.bf16.xpose.msra.mxu0 0
    %815 = vmatprep.subr.bf16.mxu0 0
    %816 = vmatpush1.bf16.xpose.msra.mxu0 %v799
    %817 = vmatprep.subr.bf16.mxu0 0
    %818 = vmatpush2.bf16.xpose.msra.mxu0 0
    %819 = vmatprep.subr.bf16.mxu0 0
    %820 = vmatpush2.bf16.xpose.msra.mxu0 0
    %821 = vmatprep.subr.bf16.mxu0 0
    %822 = vmatpush2.bf16.xpose.msra.mxu0 0
    %823 = vmatprep.subr.bf16.mxu0 0
    %824 = vmatpush2.bf16.xpose.msra.mxu0 0
    %825 = vmatprep.subr.bf16.mxu0 0
    %826 = vmatpush2.bf16.xpose.msra.mxu0 0
    %827 = vmatprep.subr.bf16.mxu0 0
    %828 = vmatpush2.bf16.xpose.msra.mxu0 0
    %829 = vmatprep.subr.bf16.mxu0 0
    %830 = vmatpush2.bf16.xpose.msra.mxu0 0
    %831 = vmatprep.subr.bf16.mxu0 0
    %832 = vmatpush2.bf16.xpose.msra.mxu0 0
    %833 = vmatprep.mubr.bf16.mxu0 0
    %834 = vmatmul.mubr.bf16.gmra.mxu0 %v796
    %v835 = vpop.f32.mrf.mxu0
    %v836 = vadd.f32 0.0, %v835
    %v837 = vpop.f32.mrf.mxu0
    %v838 = vpop.f32.mrf.mxu0
    %v839 = vpop.f32.mrf.mxu0
    %840 = vdwg.mxu0
    %842 = vrot.lane.b32.xlu0 %v345, 120
    %v843 = vpop.permute.xlu0 %842
    %v845 = vsel %vm318, %v345, 0
    %v848 = vsel %vm318, %v843, 0
    %850 = vmatprep.subr.bf16.mxu0 0
    %851 = vmatpush1.bf16.xpose.msra.mxu0 0
    %852 = vmatprep.subr.bf16.mxu0 0
    %853 = vmatpush1.bf16.xpose.msra.mxu0 0
    %854 = vmatprep.subr.bf16.mxu0 0
    %855 = vmatpush1.bf16.xpose.msra.mxu0 0
    %856 = vmatprep.subr.bf16.mxu0 0
    %857 = vmatpush1.bf16.xpose.msra.mxu0 0
    %858 = vmatprep.subr.bf16.mxu0 0
    %859 = vmatpush1.bf16.xpose.msra.mxu0 0
    %860 = vmatprep.subr.bf16.mxu0 0
    %861 = vmatpush1.bf16.xpose.msra.mxu0 0
    %862 = vmatprep.subr.bf16.mxu0 0
    %863 = vmatpush1.bf16.xpose.msra.mxu0 0
    %864 = vmatprep.subr.bf16.mxu0 0
    %865 = vmatpush1.bf16.xpose.msra.mxu0 %v848
    %866 = vmatprep.subr.bf16.mxu0 0
    %867 = vmatpush2.bf16.xpose.msra.mxu0 0
    %868 = vmatprep.subr.bf16.mxu0 0
    %869 = vmatpush2.bf16.xpose.msra.mxu0 0
    %870 = vmatprep.subr.bf16.mxu0 0
    %871 = vmatpush2.bf16.xpose.msra.mxu0 0
    %872 = vmatprep.subr.bf16.mxu0 0
    %873 = vmatpush2.bf16.xpose.msra.mxu0 0
    %874 = vmatprep.subr.bf16.mxu0 0
    %875 = vmatpush2.bf16.xpose.msra.mxu0 0
    %876 = vmatprep.subr.bf16.mxu0 0
    %877 = vmatpush2.bf16.xpose.msra.mxu0 0
    %878 = vmatprep.subr.bf16.mxu0 0
    %879 = vmatpush2.bf16.xpose.msra.mxu0 0
    %880 = vmatprep.subr.bf16.mxu0 0
    %881 = vmatpush2.bf16.xpose.msra.mxu0 0
    %882 = vmatprep.mubr.bf16.mxu0 0
    %883 = vmatmul.mubr.bf16.gmra.mxu0 %v845
    %v884 = vpop.f32.mrf.mxu0
    %v885 = vadd.f32 0.0, %v884
    %v886 = vpop.f32.mrf.mxu0
    %v887 = vpop.f32.mrf.mxu0
    %v888 = vpop.f32.mrf.mxu0
    %889 = vdwg.mxu0
    %891 = vrot.lane.b32.xlu0 %v346, 120
    %v892 = vpop.permute.xlu0 %891
    %v894 = vsel %vm318, %v346, 0
    %v897 = vsel %vm318, %v892, 0
    %899 = vmatprep.subr.bf16.mxu0 0
    %900 = vmatpush1.bf16.xpose.msra.mxu0 0
    %901 = vmatprep.subr.bf16.mxu0 0
    %902 = vmatpush1.bf16.xpose.msra.mxu0 0
    %903 = vmatprep.subr.bf16.mxu0 0
    %904 = vmatpush1.bf16.xpose.msra.mxu0 0
    %905 = vmatprep.subr.bf16.mxu0 0
    %906 = vmatpush1.bf16.xpose.msra.mxu0 0
    %907 = vmatprep.subr.bf16.mxu0 0
    %908 = vmatpush1.bf16.xpose.msra.mxu0 0
    %909 = vmatprep.subr.bf16.mxu0 0
    %910 = vmatpush1.bf16.xpose.msra.mxu0 0
    %911 = vmatprep.subr.bf16.mxu0 0
    %912 = vmatpush1.bf16.xpose.msra.mxu0 0
    %913 = vmatprep.subr.bf16.mxu0 0
    %914 = vmatpush1.bf16.xpose.msra.mxu0 %v897
    %915 = vmatprep.subr.bf16.mxu0 0
    %916 = vmatpush2.bf16.xpose.msra.mxu0 0
    %917 = vmatprep.subr.bf16.mxu0 0
    %918 = vmatpush2.bf16.xpose.msra.mxu0 0
    %919 = vmatprep.subr.bf16.mxu0 0
    %920 = vmatpush2.bf16.xpose.msra.mxu0 0
    %921 = vmatprep.subr.bf16.mxu0 0
    %922 = vmatpush2.bf16.xpose.msra.mxu0 0
    %923 = vmatprep.subr.bf16.mxu0 0
    %924 = vmatpush2.bf16.xpose.msra.mxu0 0
    %925 = vmatprep.subr.bf16.mxu0 0
    %926 = vmatpush2.bf16.xpose.msra.mxu0 0
    %927 = vmatprep.subr.bf16.mxu0 0
    %928 = vmatpush2.bf16.xpose.msra.mxu0 0
    %929 = vmatprep.subr.bf16.mxu0 0
    %930 = vmatpush2.bf16.xpose.msra.mxu0 0
    %931 = vmatprep.mubr.bf16.mxu0 0
    %932 = vmatmul.mubr.bf16.gmra.mxu0 %v894
    %v933 = vpop.f32.mrf.mxu0
    %v934 = vadd.f32 0.0, %v933
    %v935 = vpop.f32.mrf.mxu0
    %v936 = vpop.f32.mrf.mxu0
    %v937 = vpop.f32.mrf.mxu0
    %938 = vdwg.mxu0
    %940 = vrot.lane.b32.xlu0 %v347, 120
    %v941 = vpop.permute.xlu0 %940
    %v943 = vsel %vm318, %v347, 0
    %v946 = vsel %vm318, %v941, 0
    %948 = vmatprep.subr.bf16.mxu0 0
    %949 = vmatpush1.bf16.xpose.msra.mxu0 0
    %950 = vmatprep.subr.bf16.mxu0 0
    %951 = vmatpush1.bf16.xpose.msra.mxu0 0
    %952 = vmatprep.subr.bf16.mxu0 0
    %953 = vmatpush1.bf16.xpose.msra.mxu0 0
    %954 = vmatprep.subr.bf16.mxu0 0
    %955 = vmatpush1.bf16.xpose.msra.mxu0 0
    %956 = vmatprep.subr.bf16.mxu0 0
    %957 = vmatpush1.bf16.xpose.msra.mxu0 0
    %958 = vmatprep.subr.bf16.mxu0 0
    %959 = vmatpush1.bf16.xpose.msra.mxu0 0
    %960 = vmatprep.subr.bf16.mxu0 0
    %961 = vmatpush1.bf16.xpose.msra.mxu0 0
    %962 = vmatprep.subr.bf16.mxu0 0
    %963 = vmatpush1.bf16.xpose.msra.mxu0 %v946
    %964 = vmatprep.subr.bf16.mxu0 0
    %965 = vmatpush2.bf16.xpose.msra.mxu0 0
    %966 = vmatprep.subr.bf16.mxu0 0
    %967 = vmatpush2.bf16.xpose.msra.mxu0 0
    %968 = vmatprep.subr.bf16.mxu0 0
    %969 = vmatpush2.bf16.xpose.msra.mxu0 0
    %970 = vmatprep.subr.bf16.mxu0 0
    %971 = vmatpush2.bf16.xpose.msra.mxu0 0
    %972 = vmatprep.subr.bf16.mxu0 0
    %973 = vmatpush2.bf16.xpose.msra.mxu0 0
    %974 = vmatprep.subr.bf16.mxu0 0
    %975 = vmatpush2.bf16.xpose.msra.mxu0 0
    %976 = vmatprep.subr.bf16.mxu0 0
    %977 = vmatpush2.bf16.xpose.msra.mxu0 0
    %978 = vmatprep.subr.bf16.mxu0 0
    %979 = vmatpush2.bf16.xpose.msra.mxu0 0
    %980 = vmatprep.mubr.bf16.mxu0 0
    %981 = vmatmul.mubr.bf16.gmra.mxu0 %v943
    %v982 = vpop.f32.mrf.mxu0
    %v983 = vadd.f32 0.0, %v982
    %v984 = vpop.f32.mrf.mxu0
    %v985 = vpop.f32.mrf.mxu0
    %v986 = vpop.f32.mrf.mxu0
    %987 = vdwg.mxu0
    %989 = vrot.lane.b32.xlu0 %v348, 120
    %v990 = vpop.permute.xlu0 %989
    %v992 = vsel %vm318, %v348, 0
    %v995 = vsel %vm318, %v990, 0
    %997 = vmatprep.subr.bf16.mxu0 0
    %998 = vmatpush1.bf16.xpose.msra.mxu0 0
    %999 = vmatprep.subr.bf16.mxu0 0
    %1000 = vmatpush1.bf16.xpose.msra.mxu0 0
    %1001 = vmatprep.subr.bf16.mxu0 0
    %1002 = vmatpush1.bf16.xpose.msra.mxu0 0
    %1003 = vmatprep.subr.bf16.mxu0 0
    %1004 = vmatpush1.bf16.xpose.msra.mxu0 0
    %1005 = vmatprep.subr.bf16.mxu0 0
    %1006 = vmatpush1.bf16.xpose.msra.mxu0 0
    %1007 = vmatprep.subr.bf16.mxu0 0
    %1008 = vmatpush1.bf16.xpose.msra.mxu0 0
    %1009 = vmatprep.subr.bf16.mxu0 0
    %1010 = vmatpush1.bf16.xpose.msra.mxu0 0
    %1011 = vmatprep.subr.bf16.mxu0 0
    %1012 = vmatpush1.bf16.xpose.msra.mxu0 %v995
    %1013 = vmatprep.subr.bf16.mxu0 0
    %1014 = vmatpush2.bf16.xpose.msra.mxu0 0
    %1015 = vmatprep.subr.bf16.mxu0 0
    %1016 = vmatpush2.bf16.xpose.msra.mxu0 0
    %1017 = vmatprep.subr.bf16.mxu0 0
    %1018 = vmatpush2.bf16.xpose.msra.mxu0 0
    %1019 = vmatprep.subr.bf16.mxu0 0
    %1020 = vmatpush2.bf16.xpose.msra.mxu0 0
    %1021 = vmatprep.subr.bf16.mxu0 0
    %1022 = vmatpush2.bf16.xpose.msra.mxu0 0
    %1023 = vmatprep.subr.bf16.mxu0 0
    %1024 = vmatpush2.bf16.xpose.msra.mxu0 0
    %1025 = vmatprep.subr.bf16.mxu0 0
    %1026 = vmatpush2.bf16.xpose.msra.mxu0 0
    %1027 = vmatprep.subr.bf16.mxu0 0
    %1028 = vmatpush2.bf16.xpose.msra.mxu0 0
    %1029 = vmatprep.mubr.bf16.mxu0 0
    %1030 = vmatmul.mubr.bf16.gmra.mxu0 %v992
    %v1031 = vpop.f32.mrf.mxu0
    %v1032 = vadd.f32 0.0, %v1031
    %v1033 = vpop.f32.mrf.mxu0
    %v1034 = vpop.f32.mrf.mxu0
    %v1035 = vpop.f32.mrf.mxu0
    %1036 = vdwg.mxu0
    %1038 = vrot.lane.b32.xlu0 %v349, 120
    %v1039 = vpop.permute.xlu0 %1038
    %v1041 = vsel %vm318, %v349, 0
    %v1044 = vsel %vm318, %v1039, 0
    %1046 = vmatprep.subr.bf16.mxu0 0
    %1047 = vmatpush1.bf16.xpose.msra.mxu0 0
    %1048 = vmatprep.subr.bf16.mxu0 0
    %1049 = vmatpush1.bf16.xpose.msra.mxu0 0
    %1050 = vmatprep.subr.bf16.mxu0 0
    %1051 = vmatpush1.bf16.xpose.msra.mxu0 0
    %1052 = vmatprep.subr.bf16.mxu0 0
    %1053 = vmatpush1.bf16.xpose.msra.mxu0 0
    %1054 = vmatprep.subr.bf16.mxu0 0
    %1055 = vmatpush1.bf16.xpose.msra.mxu0 0
    %1056 = vmatprep.subr.bf16.mxu0 0
    %1057 = vmatpush1.bf16.xpose.msra.mxu0 0
    %1058 = vmatprep.subr.bf16.mxu0 0
    %1059 = vmatpush1.bf16.xpose.msra.mxu0 0
    %1060 = vmatprep.subr.bf16.mxu0 0
    %1061 = vmatpush1.bf16.xpose.msra.mxu0 %v1044
    %1062 = vmatprep.subr.bf16.mxu0 0
    %1063 = vmatpush2.bf16.xpose.msra.mxu0 0
    %1064 = vmatprep.subr.bf16.mxu0 0
    %1065 = vmatpush2.bf16.xpose.msra.mxu0 0
    %1066 = vmatprep.subr.bf16.mxu0 0
    %1067 = vmatpush2.bf16.xpose.msra.mxu0 0
    %1068 = vmatprep.subr.bf16.mxu0 0
    %1069 = vmatpush2.bf16.xpose.msra.mxu0 0
    %1070 = vmatprep.subr.bf16.mxu0 0
    %1071 = vmatpush2.bf16.xpose.msra.mxu0 0
    %1072 = vmatprep.subr.bf16.mxu0 0
    %1073 = vmatpush2.bf16.xpose.msra.mxu0 0
    %1074 = vmatprep.subr.bf16.mxu0 0
    %1075 = vmatpush2.bf16.xpose.msra.mxu0 0
    %1076 = vmatprep.subr.bf16.mxu0 0
    %1077 = vmatpush2.bf16.xpose.msra.mxu0 0
    %1078 = vmatprep.mubr.bf16.mxu0 0
    %1079 = vmatmul.mubr.bf16.gmra.mxu0 %v1041
    %v1080 = vpop.f32.mrf.mxu0
    %v1081 = vadd.f32 0.0, %v1080
    %v1082 = vpop.f32.mrf.mxu0
    %v1083 = vpop.f32.mrf.mxu0
    %v1084 = vpop.f32.mrf.mxu0
    %1085 = vdwg.mxu0
    %1087 = vrot.lane.b32.xlu0 %v350, 120
    %v1088 = vpop.permute.xlu0 %1087
    %v1090 = vsel %vm318, %v350, 0
    %v1093 = vsel %vm318, %v1088, 0
    %1095 = vmatprep.subr.bf16.mxu0 0
    %1096 = vmatpush1.bf16.xpose.msra.mxu0 0
    %1097 = vmatprep.subr.bf16.mxu0 0
    %1098 = vmatpush1.bf16.xpose.msra.mxu0 0
    %1099 = vmatprep.subr.bf16.mxu0 0
    %1100 = vmatpush1.bf16.xpose.msra.mxu0 0
    %1101 = vmatprep.subr.bf16.mxu0 0
    %1102 = vmatpush1.bf16.xpose.msra.mxu0 0
    %1103 = vmatprep.subr.bf16.mxu0 0
    %1104 = vmatpush1.bf16.xpose.msra.mxu0 0
    %1105 = vmatprep.subr.bf16.mxu0 0
    %1106 = vmatpush1.bf16.xpose.msra.mxu0 0
    %1107 = vmatprep.subr.bf16.mxu0 0
    %1108 = vmatpush1.bf16.xpose.msra.mxu0 0
    %1109 = vmatprep.subr.bf16.mxu0 0
    %1110 = vmatpush1.bf16.xpose.msra.mxu0 %v1093
    %1111 = vmatprep.subr.bf16.mxu0 0
    %1112 = vmatpush2.bf16.xpose.msra.mxu0 0
    %1113 = vmatprep.subr.bf16.mxu0 0
    %1114 = vmatpush2.bf16.xpose.msra.mxu0 0
    %1115 = vmatprep.subr.bf16.mxu0 0
    %1116 = vmatpush2.bf16.xpose.msra.mxu0 0
    %1117 = vmatprep.subr.bf16.mxu0 0
    %1118 = vmatpush2.bf16.xpose.msra.mxu0 0
    %1119 = vmatprep.subr.bf16.mxu0 0
    %1120 = vmatpush2.bf16.xpose.msra.mxu0 0
    %1121 = vmatprep.subr.bf16.mxu0 0
    %1122 = vmatpush2.bf16.xpose.msra.mxu0 0
    %1123 = vmatprep.subr.bf16.mxu0 0
    %1124 = vmatpush2.bf16.xpose.msra.mxu0 0
    %1125 = vmatprep.subr.bf16.mxu0 0
    %1126 = vmatpush2.bf16.xpose.msra.mxu0 0
    %1127 = vmatprep.mubr.bf16.mxu0 0
    %1128 = vmatmul.mubr.bf16.gmra.mxu0 %v1090
    %v1129 = vpop.f32.mrf.mxu0
    %v1130 = vadd.f32 0.0, %v1129
    %v1131 = vpop.f32.mrf.mxu0
    %v1132 = vpop.f32.mrf.mxu0
    %v1133 = vpop.f32.mrf.mxu0
    %1134 = vdwg.mxu0
    %v1135 = vsel %vm318, %v395, -inf
    %1136 = vmax.xlane.f32.xlu0 %v1135
    %v1137 = vpop.xlane.xlu0 %1136
    %v1138 = vsel %vm318, %v444, -inf
    %1139 = vmax.xlane.f32.xlu0 %v1138
    %v1140 = vpop.xlane.xlu0 %1139
    %v1141 = vsel %vm318, %v493, -inf
    %1142 = vmax.xlane.f32.xlu0 %v1141
    %v1143 = vpop.xlane.xlu0 %1142
    %v1144 = vsel %vm318, %v542, -inf
    %1145 = vmax.xlane.f32.xlu0 %v1144
    %v1146 = vpop.xlane.xlu0 %1145
    %v1147 = vsel %vm318, %v591, -inf
    %1148 = vmax.xlane.f32.xlu0 %v1147
    %v1149 = vpop.xlane.xlu0 %1148
    %v1150 = vsel %vm318, %v640, -inf
    %1151 = vmax.xlane.f32.xlu0 %v1150
    %v1152 = vpop.xlane.xlu0 %1151
    %v1153 = vsel %vm318, %v689, -inf
    %1154 = vmax.xlane.f32.xlu0 %v1153
    %v1155 = vpop.xlane.xlu0 %1154
    %v1156 = vsel %vm318, %v738, -inf
    %1157 = vmax.xlane.f32.xlu0 %v1156
    %v1158 = vpop.xlane.xlu0 %1157
    %v1159 = vsel %vm318, %v787, -inf
    %1160 = vmax.xlane.f32.xlu0 %v1159
    %v1161 = vpop.xlane.xlu0 %1160
    %v1162 = vsel %vm318, %v836, -inf
    %1163 = vmax.xlane.f32.xlu0 %v1162
    %v1164 = vpop.xlane.xlu0 %1163
    %v1165 = vsel %vm318, %v885, -inf
    %1166 = vmax.xlane.f32.xlu0 %v1165
    %v1167 = vpop.xlane.xlu0 %1166
    %v1168 = vsel %vm318, %v934, -inf
    %1169 = vmax.xlane.f32.xlu0 %v1168
    %v1170 = vpop.xlane.xlu0 %1169
    %v1171 = vsel %vm318, %v983, -inf
    %1172 = vmax.xlane.f32.xlu0 %v1171
    %v1173 = vpop.xlane.xlu0 %1172
    %v1174 = vsel %vm318, %v1032, -inf
    %1175 = vmax.xlane.f32.xlu0 %v1174
    %v1176 = vpop.xlane.xlu0 %1175
    %v1177 = vsel %vm318, %v1081, -inf
    %1178 = vmax.xlane.f32.xlu0 %v1177
    %v1179 = vpop.xlane.xlu0 %1178
    %v1180 = vsel %vm318, %v1130, -inf
    %1181 = vmax.xlane.f32.xlu0 %v1180
    %v1182 = vpop.xlane.xlu0 %1181
    %v1183 = vsub.f32 %v395, %v1137
    %v1184 = vsub.f32 %v444, %v1140
    %v1185 = vsub.f32 %v493, %v1143
    %v1186 = vsub.f32 %v542, %v1146
    %v1187 = vsub.f32 %v591, %v1149
    %v1188 = vsub.f32 %v640, %v1152
    %v1189 = vsub.f32 %v689, %v1155
    %v1190 = vsub.f32 %v738, %v1158
    %v1191 = vsub.f32 %v787, %v1161
    %v1192 = vsub.f32 %v836, %v1164
    %v1193 = vsub.f32 %v885, %v1167
    %v1194 = vsub.f32 %v934, %v1170
    %v1195 = vsub.f32 %v983, %v1173
    %v1196 = vsub.f32 %v1032, %v1176
    %v1197 = vsub.f32 %v1081, %v1179
    %v1198 = vsub.f32 %v1130, %v1182
    %v1199 = vmul.f32 %v1183, 1.442695
    %v1200 = vpow.pop %v1199
    %v1201 = vmul.f32 %v1184, 1.442695
    %v1202 = vpow.pop %v1201
    %v1203 = vmul.f32 %v1185, 1.442695
    %v1204 = vpow.pop %v1203
    %v1205 = vmul.f32 %v1186, 1.442695
    %v1206 = vpow.pop %v1205
    %v1207 = vmul.f32 %v1187, 1.442695
    %v1208 = vpow.pop %v1207
    %v1209 = vmul.f32 %v1188, 1.442695
    %v1210 = vpow.pop %v1209
    %v1211 = vmul.f32 %v1189, 1.442695
    %v1212 = vpow.pop %v1211
    %v1213 = vmul.f32 %v1190, 1.442695
    %v1214 = vpow.pop %v1213
    %v1215 = vmul.f32 %v1191, 1.442695
    %v1216 = vpow.pop %v1215
    %v1217 = vmul.f32 %v1192, 1.442695
    %v1218 = vpow.pop %v1217
    %v1219 = vmul.f32 %v1193, 1.442695
    %v1220 = vpow.pop %v1219
    %v1221 = vmul.f32 %v1194, 1.442695
    %v1222 = vpow.pop %v1221
    %v1223 = vmul.f32 %v1195, 1.442695
    %v1224 = vpow.pop %v1223
    %v1225 = vmul.f32 %v1196, 1.442695
    %v1226 = vpow.pop %v1225
    %v1227 = vmul.f32 %v1197, 1.442695
    %v1228 = vpow.pop %v1227
    %v1229 = vmul.f32 %v1198, 1.442695
    %v1230 = vpow.pop %v1229
    %v1231 = vsel %vm318, %v1200, 0.0
    %1232 = vadd.xlane.f32.xlu0 %v1231
    %v1233 = vpop.xlane.xlu0 %1232
    %v1234 = vsel %vm318, %v1202, 0.0
    %1235 = vadd.xlane.f32.xlu0 %v1234
    %v1236 = vpop.xlane.xlu0 %1235
    %v1237 = vsel %vm318, %v1204, 0.0
    %1238 = vadd.xlane.f32.xlu0 %v1237
    %v1239 = vpop.xlane.xlu0 %1238
    %v1240 = vsel %vm318, %v1206, 0.0
    %1241 = vadd.xlane.f32.xlu0 %v1240
    %v1242 = vpop.xlane.xlu0 %1241
    %v1243 = vsel %vm318, %v1208, 0.0
    %1244 = vadd.xlane.f32.xlu0 %v1243
    %v1245 = vpop.xlane.xlu0 %1244
    %v1246 = vsel %vm318, %v1210, 0.0
    %1247 = vadd.xlane.f32.xlu0 %v1246
    %v1248 = vpop.xlane.xlu0 %1247
    %v1249 = vsel %vm318, %v1212, 0.0
    %1250 = vadd.xlane.f32.xlu0 %v1249
    %v1251 = vpop.xlane.xlu0 %1250
    %v1252 = vsel %vm318, %v1214, 0.0
    %1253 = vadd.xlane.f32.xlu0 %v1252
    %v1254 = vpop.xlane.xlu0 %1253
    %v1255 = vsel %vm318, %v1216, 0.0
    %1256 = vadd.xlane.f32.xlu0 %v1255
    %v1257 = vpop.xlane.xlu0 %1256
    %v1258 = vsel %vm318, %v1218, 0.0
    %1259 = vadd.xlane.f32.xlu0 %v1258
    %v1260 = vpop.xlane.xlu0 %1259
    %v1261 = vsel %vm318, %v1220, 0.0
    %1262 = vadd.xlane.f32.xlu0 %v1261
    %v1263 = vpop.xlane.xlu0 %1262
    %v1264 = vsel %vm318, %v1222, 0.0
    %1265 = vadd.xlane.f32.xlu0 %v1264
    %v1266 = vpop.xlane.xlu0 %1265
    %v1267 = vsel %vm318, %v1224, 0.0
    %1268 = vadd.xlane.f32.xlu0 %v1267
    %v1269 = vpop.xlane.xlu0 %1268
    %v1270 = vsel %vm318, %v1226, 0.0
    %1271 = vadd.xlane.f32.xlu0 %v1270
    %v1272 = vpop.xlane.xlu0 %1271
    %v1273 = vsel %vm318, %v1228, 0.0
    %1274 = vadd.xlane.f32.xlu0 %v1273
    %v1275 = vpop.xlane.xlu0 %1274
    %v1276 = vsel %vm318, %v1230, 0.0
    %1277 = vadd.xlane.f32.xlu0 %v1276
    %v1278 = vpop.xlane.xlu0 %1277
    %v1279 = vrcp.pop %v1233
    %v1280 = vrcp.pop %v1236
    %v1281 = vrcp.pop %v1239
    %v1282 = vrcp.pop %v1242
    %v1283 = vrcp.pop %v1245
    %v1284 = vrcp.pop %v1248
    %v1285 = vrcp.pop %v1251
    %v1286 = vrcp.pop %v1254
    %v1287 = vrcp.pop %v1257
    %v1288 = vrcp.pop %v1260
    %v1289 = vrcp.pop %v1263
    %v1290 = vrcp.pop %v1266
    %v1291 = vrcp.pop %v1269
    %v1292 = vrcp.pop %v1272
    %v1293 = vrcp.pop %v1275
    %v1294 = vrcp.pop %v1278
    %v1295 = vmul.f32 %v1200, %v1279
    %v1296 = vmul.f32 %v1202, %v1280
    %v1297 = vmul.f32 %v1204, %v1281
    %v1298 = vmul.f32 %v1206, %v1282
    %v1299 = vmul.f32 %v1208, %v1283
    %v1300 = vmul.f32 %v1210, %v1284
    %v1301 = vmul.f32 %v1212, %v1285
    %v1302 = vmul.f32 %v1214, %v1286
    %v1303 = vmul.f32 %v1216, %v1287
    %v1304 = vmul.f32 %v1218, %v1288
    %v1305 = vmul.f32 %v1220, %v1289
    %v1306 = vmul.f32 %v1222, %v1290
    %v1307 = vmul.f32 %v1224, %v1291
    %v1308 = vmul.f32 %v1226, %v1292
    %v1309 = vmul.f32 %v1228, %v1293
    %v1310 = vmul.f32 %v1230, %v1294
    %v1311 = vpack.c.bf16 %v1295, %v1295
    %v1312 = vpack.c.bf16 %v1296, %v1296
    %v1313 = vpack.c.bf16 %v1297, %v1297
    %v1314 = vpack.c.bf16 %v1298, %v1298
    %v1315 = vpack.c.bf16 %v1299, %v1299
    %v1316 = vpack.c.bf16 %v1300, %v1300
    %v1317 = vpack.c.bf16 %v1301, %v1301
    %v1318 = vpack.c.bf16 %v1302, %v1302
    %v1319 = vpack.c.bf16 %v1303, %v1303
    %v1320 = vpack.c.bf16 %v1304, %v1304
    %v1321 = vpack.c.bf16 %v1305, %v1305
    %v1322 = vpack.c.bf16 %v1306, %v1306
    %v1323 = vpack.c.bf16 %v1307, %v1307
    %v1324 = vpack.c.bf16 %v1308, %v1308
    %v1325 = vpack.c.bf16 %v1309, %v1309
    %v1326 = vpack.c.bf16 %v1310, %v1310
    %1327 = vrot.lane.b32.xlu0 %v335, 112
    %v1328 = vpop.permute.xlu0 %1327
    %v1330 = vsel %vm318, %v1311, 0
    %vm1332 = vcmask 1043456
    %v1334 = vsel %vm1332, %v1328, 0
    %1336 = vmatprep.subr.bf16.mxu0 0
    %1337 = vmatpush1.bf16.msra.mxu0 0
    %1338 = vmatprep.subr.bf16.mxu0 0
    %1339 = vmatpush1.bf16.msra.mxu0 0
    %1340 = vmatprep.subr.bf16.mxu0 0
    %1341 = vmatpush1.bf16.msra.mxu0 0
    %1342 = vmatprep.subr.bf16.mxu0 0
    %1343 = vmatpush1.bf16.msra.mxu0 0
    %1344 = vmatprep.subr.bf16.mxu0 0
    %1345 = vmatpush1.bf16.msra.mxu0 0
    %1346 = vmatprep.subr.bf16.mxu0 0
    %1347 = vmatpush1.bf16.msra.mxu0 0
    %1348 = vmatprep.subr.bf16.mxu0 0
    %1349 = vmatpush1.bf16.msra.mxu0 0
    %1350 = vmatprep.subr.bf16.mxu0 0
    %1351 = vmatpush1.bf16.msra.mxu0 %v1334
    %1352 = vmatprep.subr.bf16.mxu0 0
    %1353 = vmatpush2.bf16.msra.mxu0 0
    %1354 = vmatprep.subr.bf16.mxu0 0
    %1355 = vmatpush2.bf16.msra.mxu0 0
    %1356 = vmatprep.subr.bf16.mxu0 0
    %1357 = vmatpush2.bf16.msra.mxu0 0
    %1358 = vmatprep.subr.bf16.mxu0 0
    %1359 = vmatpush2.bf16.msra.mxu0 0
    %1360 = vmatprep.subr.bf16.mxu0 0
    %1361 = vmatpush2.bf16.msra.mxu0 0
    %1362 = vmatprep.subr.bf16.mxu0 0
    %1363 = vmatpush2.bf16.msra.mxu0 0
    %1364 = vmatprep.subr.bf16.mxu0 0
    %1365 = vmatpush2.bf16.msra.mxu0 0
    %1366 = vmatprep.subr.bf16.mxu0 0
    %1367 = vmatpush2.bf16.msra.mxu0 0
    %1368 = vmatprep.mubr.bf16.mxu0 0
    %1369 = vmatmul.mubr.bf16.gmra.mxu0 %v1330
    %v1370 = vpop.f32.mrf.mxu0
    %v1371 = vadd.f32 0.0, %v1370
    %v1372 = vpop.f32.mrf.mxu0
    %v1373 = vpop.f32.mrf.mxu0
    %v1374 = vpop.f32.mrf.mxu0
    %1375 = vdwg.mxu0
    %1376 = vrot.lane.b32.xlu0 %v336, 112
    %v1377 = vpop.permute.xlu0 %1376
    %v1379 = vsel %vm318, %v1312, 0
    %v1382 = vsel %vm1332, %v1377, 0
    %1384 = vmatprep.subr.bf16.mxu0 0
    %1385 = vmatpush1.bf16.msra.mxu0 0
    %1386 = vmatprep.subr.bf16.mxu0 0
    %1387 = vmatpush1.bf16.msra.mxu0 0
    %1388 = vmatprep.subr.bf16.mxu0 0
    %1389 = vmatpush1.bf16.msra.mxu0 0
    %1390 = vmatprep.subr.bf16.mxu0 0
    %1391 = vmatpush1.bf16.msra.mxu0 0
    %1392 = vmatprep.subr.bf16.mxu0 0
    %1393 = vmatpush1.bf16.msra.mxu0 0
    %1394 = vmatprep.subr.bf16.mxu0 0
    %1395 = vmatpush1.bf16.msra.mxu0 0
    %1396 = vmatprep.subr.bf16.mxu0 0
    %1397 = vmatpush1.bf16.msra.mxu0 0
    %1398 = vmatprep.subr.bf16.mxu0 0
    %1399 = vmatpush1.bf16.msra.mxu0 %v1382
    %1400 = vmatprep.subr.bf16.mxu0 0
    %1401 = vmatpush2.bf16.msra.mxu0 0
    %1402 = vmatprep.subr.bf16.mxu0 0
    %1403 = vmatpush2.bf16.msra.mxu0 0
    %1404 = vmatprep.subr.bf16.mxu0 0
    %1405 = vmatpush2.bf16.msra.mxu0 0
    %1406 = vmatprep.subr.bf16.mxu0 0
    %1407 = vmatpush2.bf16.msra.mxu0 0
    %1408 = vmatprep.subr.bf16.mxu0 0
    %1409 = vmatpush2.bf16.msra.mxu0 0
    %1410 = vmatprep.subr.bf16.mxu0 0
    %1411 = vmatpush2.bf16.msra.mxu0 0
    %1412 = vmatprep.subr.bf16.mxu0 0
    %1413 = vmatpush2.bf16.msra.mxu0 0
    %1414 = vmatprep.subr.bf16.mxu0 0
    %1415 = vmatpush2.bf16.msra.mxu0 0
    %1416 = vmatprep.mubr.bf16.mxu0 0
    %1417 = vmatmul.mubr.bf16.gmra.mxu0 %v1379
    %v1418 = vpop.f32.mrf.mxu0
    %v1419 = vadd.f32 0.0, %v1418
    %v1420 = vpop.f32.mrf.mxu0
    %v1421 = vpop.f32.mrf.mxu0
    %v1422 = vpop.f32.mrf.mxu0
    %1423 = vdwg.mxu0
    %1424 = vrot.lane.b32.xlu0 %v337, 112
    %v1425 = vpop.permute.xlu0 %1424
    %v1427 = vsel %vm318, %v1313, 0
    %v1430 = vsel %vm1332, %v1425, 0
    %1432 = vmatprep.subr.bf16.mxu0 0
    %1433 = vmatpush1.bf16.msra.mxu0 0
    %1434 = vmatprep.subr.bf16.mxu0 0
    %1435 = vmatpush1.bf16.msra.mxu0 0
    %1436 = vmatprep.subr.bf16.mxu0 0
    %1437 = vmatpush1.bf16.msra.mxu0 0
    %1438 = vmatprep.subr.bf16.mxu0 0
    %1439 = vmatpush1.bf16.msra.mxu0 0
    %1440 = vmatprep.subr.bf16.mxu0 0
    %1441 = vmatpush1.bf16.msra.mxu0 0
    %1442 = vmatprep.subr.bf16.mxu0 0
    %1443 = vmatpush1.bf16.msra.mxu0 0
    %1444 = vmatprep.subr.bf16.mxu0 0
    %1445 = vmatpush1.bf16.msra.mxu0 0
    %1446 = vmatprep.subr.bf16.mxu0 0
    %1447 = vmatpush1.bf16.msra.mxu0 %v1430
    %1448 = vmatprep.subr.bf16.mxu0 0
    %1449 = vmatpush2.bf16.msra.mxu0 0
    %1450 = vmatprep.subr.bf16.mxu0 0
    %1451 = vmatpush2.bf16.msra.mxu0 0
    %1452 = vmatprep.subr.bf16.mxu0 0
    %1453 = vmatpush2.bf16.msra.mxu0 0
    %1454 = vmatprep.subr.bf16.mxu0 0
    %1455 = vmatpush2.bf16.msra.mxu0 0
    %1456 = vmatprep.subr.bf16.mxu0 0
    %1457 = vmatpush2.bf16.msra.mxu0 0
    %1458 = vmatprep.subr.bf16.mxu0 0
    %1459 = vmatpush2.bf16.msra.mxu0 0
    %1460 = vmatprep.subr.bf16.mxu0 0
    %1461 = vmatpush2.bf16.msra.mxu0 0
    %1462 = vmatprep.subr.bf16.mxu0 0
    %1463 = vmatpush2.bf16.msra.mxu0 0
    %1464 = vmatprep.mubr.bf16.mxu0 0
    %1465 = vmatmul.mubr.bf16.gmra.mxu0 %v1427
    %v1466 = vpop.f32.mrf.mxu0
    %v1467 = vadd.f32 0.0, %v1466
    %v1468 = vpop.f32.mrf.mxu0
    %v1469 = vpop.f32.mrf.mxu0
    %v1470 = vpop.f32.mrf.mxu0
    %1471 = vdwg.mxu0
    %1472 = vrot.lane.b32.xlu0 %v338, 112
    %v1473 = vpop.permute.xlu0 %1472
    %v1475 = vsel %vm318, %v1314, 0
    %v1478 = vsel %vm1332, %v1473, 0
    %1480 = vmatprep.subr.bf16.mxu0 0
    %1481 = vmatpush1.bf16.msra.mxu0 0
    %1482 = vmatprep.subr.bf16.mxu0 0
    %1483 = vmatpush1.bf16.msra.mxu0 0
    %1484 = vmatprep.subr.bf16.mxu0 0
    %1485 = vmatpush1.bf16.msra.mxu0 0
    %1486 = vmatprep.subr.bf16.mxu0 0
    %1487 = vmatpush1.bf16.msra.mxu0 0
    %1488 = vmatprep.subr.bf16.mxu0 0
    %1489 = vmatpush1.bf16.msra.mxu0 0
    %1490 = vmatprep.subr.bf16.mxu0 0
    %1491 = vmatpush1.bf16.msra.mxu0 0
    %1492 = vmatprep.subr.bf16.mxu0 0
    %1493 = vmatpush1.bf16.msra.mxu0 0
    %1494 = vmatprep.subr.bf16.mxu0 0
    %1495 = vmatpush1.bf16.msra.mxu0 %v1478
    %1496 = vmatprep.subr.bf16.mxu0 0
    %1497 = vmatpush2.bf16.msra.mxu0 0
    %1498 = vmatprep.subr.bf16.mxu0 0
    %1499 = vmatpush2.bf16.msra.mxu0 0
    %1500 = vmatprep.subr.bf16.mxu0 0
    %1501 = vmatpush2.bf16.msra.mxu0 0
    %1502 = vmatprep.subr.bf16.mxu0 0
    %1503 = vmatpush2.bf16.msra.mxu0 0
    %1504 = vmatprep.subr.bf16.mxu0 0
    %1505 = vmatpush2.bf16.msra.mxu0 0
    %1506 = vmatprep.subr.bf16.mxu0 0
    %1507 = vmatpush2.bf16.msra.mxu0 0
    %1508 = vmatprep.subr.bf16.mxu0 0
    %1509 = vmatpush2.bf16.msra.mxu0 0
    %1510 = vmatprep.subr.bf16.mxu0 0
    %1511 = vmatpush2.bf16.msra.mxu0 0
    %1512 = vmatprep.mubr.bf16.mxu0 0
    %1513 = vmatmul.mubr.bf16.gmra.mxu0 %v1475
    %v1514 = vpop.f32.mrf.mxu0
    %v1515 = vadd.f32 0.0, %v1514
    %v1516 = vpop.f32.mrf.mxu0
    %v1517 = vpop.f32.mrf.mxu0
    %v1518 = vpop.f32.mrf.mxu0
    %1519 = vdwg.mxu0
    %1520 = vrot.lane.b32.xlu0 %v339, 112
    %v1521 = vpop.permute.xlu0 %1520
    %v1523 = vsel %vm318, %v1315, 0
    %v1526 = vsel %vm1332, %v1521, 0
    %1528 = vmatprep.subr.bf16.mxu0 0
    %1529 = vmatpush1.bf16.msra.mxu0 0
    %1530 = vmatprep.subr.bf16.mxu0 0
    %1531 = vmatpush1.bf16.msra.mxu0 0
    %1532 = vmatprep.subr.bf16.mxu0 0
    %1533 = vmatpush1.bf16.msra.mxu0 0
    %1534 = vmatprep.subr.bf16.mxu0 0
    %1535 = vmatpush1.bf16.msra.mxu0 0
    %1536 = vmatprep.subr.bf16.mxu0 0
    %1537 = vmatpush1.bf16.msra.mxu0 0
    %1538 = vmatprep.subr.bf16.mxu0 0
    %1539 = vmatpush1.bf16.msra.mxu0 0
    %1540 = vmatprep.subr.bf16.mxu0 0
    %1541 = vmatpush1.bf16.msra.mxu0 0
    %1542 = vmatprep.subr.bf16.mxu0 0
    %1543 = vmatpush1.bf16.msra.mxu0 %v1526
    %1544 = vmatprep.subr.bf16.mxu0 0
    %1545 = vmatpush2.bf16.msra.mxu0 0
    %1546 = vmatprep.subr.bf16.mxu0 0
    %1547 = vmatpush2.bf16.msra.mxu0 0
    %1548 = vmatprep.subr.bf16.mxu0 0
    %1549 = vmatpush2.bf16.msra.mxu0 0
    %1550 = vmatprep.subr.bf16.mxu0 0
    %1551 = vmatpush2.bf16.msra.mxu0 0
    %1552 = vmatprep.subr.bf16.mxu0 0
    %1553 = vmatpush2.bf16.msra.mxu0 0
    %1554 = vmatprep.subr.bf16.mxu0 0
    %1555 = vmatpush2.bf16.msra.mxu0 0
    %1556 = vmatprep.subr.bf16.mxu0 0
    %1557 = vmatpush2.bf16.msra.mxu0 0
    %1558 = vmatprep.subr.bf16.mxu0 0
    %1559 = vmatpush2.bf16.msra.mxu0 0
    %1560 = vmatprep.mubr.bf16.mxu0 0
    %1561 = vmatmul.mubr.bf16.gmra.mxu0 %v1523
    %v1562 = vpop.f32.mrf.mxu0
    %v1563 = vadd.f32 0.0, %v1562
    %v1564 = vpop.f32.mrf.mxu0
    %v1565 = vpop.f32.mrf.mxu0
    %v1566 = vpop.f32.mrf.mxu0
    %1567 = vdwg.mxu0
    %1568 = vrot.lane.b32.xlu0 %v340, 112
    %v1569 = vpop.permute.xlu0 %1568
    %v1571 = vsel %vm318, %v1316, 0
    %v1574 = vsel %vm1332, %v1569, 0
    %1576 = vmatprep.subr.bf16.mxu0 0
    %1577 = vmatpush1.bf16.msra.mxu0 0
    %1578 = vmatprep.subr.bf16.mxu0 0
    %1579 = vmatpush1.bf16.msra.mxu0 0
    %1580 = vmatprep.subr.bf16.mxu0 0
    %1581 = vmatpush1.bf16.msra.mxu0 0
    %1582 = vmatprep.subr.bf16.mxu0 0
    %1583 = vmatpush1.bf16.msra.mxu0 0
    %1584 = vmatprep.subr.bf16.mxu0 0
    %1585 = vmatpush1.bf16.msra.mxu0 0
    %1586 = vmatprep.subr.bf16.mxu0 0
    %1587 = vmatpush1.bf16.msra.mxu0 0
    %1588 = vmatprep.subr.bf16.mxu0 0
    %1589 = vmatpush1.bf16.msra.mxu0 0
    %1590 = vmatprep.subr.bf16.mxu0 0
    %1591 = vmatpush1.bf16.msra.mxu0 %v1574
    %1592 = vmatprep.subr.bf16.mxu0 0
    %1593 = vmatpush2.bf16.msra.mxu0 0
    %1594 = vmatprep.subr.bf16.mxu0 0
    %1595 = vmatpush2.bf16.msra.mxu0 0
    %1596 = vmatprep.subr.bf16.mxu0 0
    %1597 = vmatpush2.bf16.msra.mxu0 0
    %1598 = vmatprep.subr.bf16.mxu0 0
    %1599 = vmatpush2.bf16.msra.mxu0 0
    %1600 = vmatprep.subr.bf16.mxu0 0
    %1601 = vmatpush2.bf16.msra.mxu0 0
    %1602 = vmatprep.subr.bf16.mxu0 0
    %1603 = vmatpush2.bf16.msra.mxu0 0
    %1604 = vmatprep.subr.bf16.mxu0 0
    %1605 = vmatpush2.bf16.msra.mxu0 0
    %1606 = vmatprep.subr.bf16.mxu0 0
    %1607 = vmatpush2.bf16.msra.mxu0 0
    %1608 = vmatprep.mubr.bf16.mxu0 0
    %1609 = vmatmul.mubr.bf16.gmra.mxu0 %v1571
    %v1610 = vpop.f32.mrf.mxu0
    %v1611 = vadd.f32 0.0, %v1610
    %v1612 = vpop.f32.mrf.mxu0
    %v1613 = vpop.f32.mrf.mxu0
    %v1614 = vpop.f32.mrf.mxu0
    %1615 = vdwg.mxu0
    %1616 = vrot.lane.b32.xlu0 %v341, 112
    %v1617 = vpop.permute.xlu0 %1616
    %v1619 = vsel %vm318, %v1317, 0
    %v1622 = vsel %vm1332, %v1617, 0
    %1624 = vmatprep.subr.bf16.mxu0 0
    %1625 = vmatpush1.bf16.msra.mxu0 0
    %1626 = vmatprep.subr.bf16.mxu0 0
    %1627 = vmatpush1.bf16.msra.mxu0 0
    %1628 = vmatprep.subr.bf16.mxu0 0
    %1629 = vmatpush1.bf16.msra.mxu0 0
    %1630 = vmatprep.subr.bf16.mxu0 0
    %1631 = vmatpush1.bf16.msra.mxu0 0
    %1632 = vmatprep.subr.bf16.mxu0 0
    %1633 = vmatpush1.bf16.msra.mxu0 0
    %1634 = vmatprep.subr.bf16.mxu0 0
    %1635 = vmatpush1.bf16.msra.mxu0 0
    %1636 = vmatprep.subr.bf16.mxu0 0
    %1637 = vmatpush1.bf16.msra.mxu0 0
    %1638 = vmatprep.subr.bf16.mxu0 0
    %1639 = vmatpush1.bf16.msra.mxu0 %v1622
    %1640 = vmatprep.subr.bf16.mxu0 0
    %1641 = vmatpush2.bf16.msra.mxu0 0
    %1642 = vmatprep.subr.bf16.mxu0 0
    %1643 = vmatpush2.bf16.msra.mxu0 0
    %1644 = vmatprep.subr.bf16.mxu0 0
    %1645 = vmatpush2.bf16.msra.mxu0 0
    %1646 = vmatprep.subr.bf16.mxu0 0
    %1647 = vmatpush2.bf16.msra.mxu0 0
    %1648 = vmatprep.subr.bf16.mxu0 0
    %1649 = vmatpush2.bf16.msra.mxu0 0
    %1650 = vmatprep.subr.bf16.mxu0 0
    %1651 = vmatpush2.bf16.msra.mxu0 0
    %1652 = vmatprep.subr.bf16.mxu0 0
    %1653 = vmatpush2.bf16.msra.mxu0 0
    %1654 = vmatprep.subr.bf16.mxu0 0
    %1655 = vmatpush2.bf16.msra.mxu0 0
    %1656 = vmatprep.mubr.bf16.mxu0 0
    %1657 = vmatmul.mubr.bf16.gmra.mxu0 %v1619
    %v1658 = vpop.f32.mrf.mxu0
    %v1659 = vadd.f32 0.0, %v1658
    %v1660 = vpop.f32.mrf.mxu0
    %v1661 = vpop.f32.mrf.mxu0
    %v1662 = vpop.f32.mrf.mxu0
    %1663 = vdwg.mxu0
    %1664 = vrot.lane.b32.xlu0 %v342, 112
    %v1665 = vpop.permute.xlu0 %1664
    %v1667 = vsel %vm318, %v1318, 0
    %v1670 = vsel %vm1332, %v1665, 0
    %1672 = vmatprep.subr.bf16.mxu0 0
    %1673 = vmatpush1.bf16.msra.mxu0 0
    %1674 = vmatprep.subr.bf16.mxu0 0
    %1675 = vmatpush1.bf16.msra.mxu0 0
    %1676 = vmatprep.subr.bf16.mxu0 0
    %1677 = vmatpush1.bf16.msra.mxu0 0
    %1678 = vmatprep.subr.bf16.mxu0 0
    %1679 = vmatpush1.bf16.msra.mxu0 0
    %1680 = vmatprep.subr.bf16.mxu0 0
    %1681 = vmatpush1.bf16.msra.mxu0 0
    %1682 = vmatprep.subr.bf16.mxu0 0
    %1683 = vmatpush1.bf16.msra.mxu0 0
    %1684 = vmatprep.subr.bf16.mxu0 0
    %1685 = vmatpush1.bf16.msra.mxu0 0
    %1686 = vmatprep.subr.bf16.mxu0 0
    %1687 = vmatpush1.bf16.msra.mxu0 %v1670
    %1688 = vmatprep.subr.bf16.mxu0 0
    %1689 = vmatpush2.bf16.msra.mxu0 0
    %1690 = vmatprep.subr.bf16.mxu0 0
    %1691 = vmatpush2.bf16.msra.mxu0 0
    %1692 = vmatprep.subr.bf16.mxu0 0
    %1693 = vmatpush2.bf16.msra.mxu0 0
    %1694 = vmatprep.subr.bf16.mxu0 0
    %1695 = vmatpush2.bf16.msra.mxu0 0
    %1696 = vmatprep.subr.bf16.mxu0 0
    %1697 = vmatpush2.bf16.msra.mxu0 0
    %1698 = vmatprep.subr.bf16.mxu0 0
    %1699 = vmatpush2.bf16.msra.mxu0 0
    %1700 = vmatprep.subr.bf16.mxu0 0
    %1701 = vmatpush2.bf16.msra.mxu0 0
    %1702 = vmatprep.subr.bf16.mxu0 0
    %1703 = vmatpush2.bf16.msra.mxu0 0
    %1704 = vmatprep.mubr.bf16.mxu0 0
    %1705 = vmatmul.mubr.bf16.gmra.mxu0 %v1667
    %v1706 = vpop.f32.mrf.mxu0
    %v1707 = vadd.f32 0.0, %v1706
    %v1708 = vpop.f32.mrf.mxu0
    %v1709 = vpop.f32.mrf.mxu0
    %v1710 = vpop.f32.mrf.mxu0
    %1711 = vdwg.mxu0
    %1712 = vrot.lane.b32.xlu0 %v343, 112
    %v1713 = vpop.permute.xlu0 %1712
    %v1715 = vsel %vm318, %v1319, 0
    %v1718 = vsel %vm1332, %v1713, 0
    %1720 = vmatprep.subr.bf16.mxu0 0
    %1721 = vmatpush1.bf16.msra.mxu0 0
    %1722 = vmatprep.subr.bf16.mxu0 0
    %1723 = vmatpush1.bf16.msra.mxu0 0
    %1724 = vmatprep.subr.bf16.mxu0 0
    %1725 = vmatpush1.bf16.msra.mxu0 0
    %1726 = vmatprep.subr.bf16.mxu0 0
    %1727 = vmatpush1.bf16.msra.mxu0 0
    %1728 = vmatprep.subr.bf16.mxu0 0
    %1729 = vmatpush1.bf16.msra.mxu0 0
    %1730 = vmatprep.subr.bf16.mxu0 0
    %1731 = vmatpush1.bf16.msra.mxu0 0
    %1732 = vmatprep.subr.bf16.mxu0 0
    %1733 = vmatpush1.bf16.msra.mxu0 0
    %1734 = vmatprep.subr.bf16.mxu0 0
    %1735 = vmatpush1.bf16.msra.mxu0 %v1718
    %1736 = vmatprep.subr.bf16.mxu0 0
    %1737 = vmatpush2.bf16.msra.mxu0 0
    %1738 = vmatprep.subr.bf16.mxu0 0
    %1739 = vmatpush2.bf16.msra.mxu0 0
    %1740 = vmatprep.subr.bf16.mxu0 0
    %1741 = vmatpush2.bf16.msra.mxu0 0
    %1742 = vmatprep.subr.bf16.mxu0 0
    %1743 = vmatpush2.bf16.msra.mxu0 0
    %1744 = vmatprep.subr.bf16.mxu0 0
    %1745 = vmatpush2.bf16.msra.mxu0 0
    %1746 = vmatprep.subr.bf16.mxu0 0
    %1747 = vmatpush2.bf16.msra.mxu0 0
    %1748 = vmatprep.subr.bf16.mxu0 0
    %1749 = vmatpush2.bf16.msra.mxu0 0
    %1750 = vmatprep.subr.bf16.mxu0 0
    %1751 = vmatpush2.bf16.msra.mxu0 0
    %1752 = vmatprep.mubr.bf16.mxu0 0
    %1753 = vmatmul.mubr.bf16.gmra.mxu0 %v1715
    %v1754 = vpop.f32.mrf.mxu0
    %v1755 = vadd.f32 0.0, %v1754
    %v1756 = vpop.f32.mrf.mxu0
    %v1757 = vpop.f32.mrf.mxu0
    %v1758 = vpop.f32.mrf.mxu0
    %1759 = vdwg.mxu0
    %1760 = vrot.lane.b32.xlu0 %v344, 112
    %v1761 = vpop.permute.xlu0 %1760
    %v1763 = vsel %vm318, %v1320, 0
    %v1766 = vsel %vm1332, %v1761, 0
    %1768 = vmatprep.subr.bf16.mxu0 0
    %1769 = vmatpush1.bf16.msra.mxu0 0
    %1770 = vmatprep.subr.bf16.mxu0 0
    %1771 = vmatpush1.bf16.msra.mxu0 0
    %1772 = vmatprep.subr.bf16.mxu0 0
    %1773 = vmatpush1.bf16.msra.mxu0 0
    %1774 = vmatprep.subr.bf16.mxu0 0
    %1775 = vmatpush1.bf16.msra.mxu0 0
    %1776 = vmatprep.subr.bf16.mxu0 0
    %1777 = vmatpush1.bf16.msra.mxu0 0
    %1778 = vmatprep.subr.bf16.mxu0 0
    %1779 = vmatpush1.bf16.msra.mxu0 0
    %1780 = vmatprep.subr.bf16.mxu0 0
    %1781 = vmatpush1.bf16.msra.mxu0 0
    %1782 = vmatprep.subr.bf16.mxu0 0
    %1783 = vmatpush1.bf16.msra.mxu0 %v1766
    %1784 = vmatprep.subr.bf16.mxu0 0
    %1785 = vmatpush2.bf16.msra.mxu0 0
    %1786 = vmatprep.subr.bf16.mxu0 0
    %1787 = vmatpush2.bf16.msra.mxu0 0
    %1788 = vmatprep.subr.bf16.mxu0 0
    %1789 = vmatpush2.bf16.msra.mxu0 0
    %1790 = vmatprep.subr.bf16.mxu0 0
    %1791 = vmatpush2.bf16.msra.mxu0 0
    %1792 = vmatprep.subr.bf16.mxu0 0
    %1793 = vmatpush2.bf16.msra.mxu0 0
    %1794 = vmatprep.subr.bf16.mxu0 0
    %1795 = vmatpush2.bf16.msra.mxu0 0
    %1796 = vmatprep.subr.bf16.mxu0 0
    %1797 = vmatpush2.bf16.msra.mxu0 0
    %1798 = vmatprep.subr.bf16.mxu0 0
    %1799 = vmatpush2.bf16.msra.mxu0 0
    %1800 = vmatprep.mubr.bf16.mxu0 0
    %1801 = vmatmul.mubr.bf16.gmra.mxu0 %v1763
    %v1802 = vpop.f32.mrf.mxu0
    %v1803 = vadd.f32 0.0, %v1802
    %v1804 = vpop.f32.mrf.mxu0
    %v1805 = vpop.f32.mrf.mxu0
    %v1806 = vpop.f32.mrf.mxu0
    %1807 = vdwg.mxu0
    %1808 = vrot.lane.b32.xlu0 %v345, 112
    %v1809 = vpop.permute.xlu0 %1808
    %v1811 = vsel %vm318, %v1321, 0
    %v1814 = vsel %vm1332, %v1809, 0
    %1816 = vmatprep.subr.bf16.mxu0 0
    %1817 = vmatpush1.bf16.msra.mxu0 0
    %1818 = vmatprep.subr.bf16.mxu0 0
    %1819 = vmatpush1.bf16.msra.mxu0 0
    %1820 = vmatprep.subr.bf16.mxu0 0
    %1821 = vmatpush1.bf16.msra.mxu0 0
    %1822 = vmatprep.subr.bf16.mxu0 0
    %1823 = vmatpush1.bf16.msra.mxu0 0
    %1824 = vmatprep.subr.bf16.mxu0 0
    %1825 = vmatpush1.bf16.msra.mxu0 0
    %1826 = vmatprep.subr.bf16.mxu0 0
    %1827 = vmatpush1.bf16.msra.mxu0 0
    %1828 = vmatprep.subr.bf16.mxu0 0
    %1829 = vmatpush1.bf16.msra.mxu0 0
    %1830 = vmatprep.subr.bf16.mxu0 0
    %1831 = vmatpush1.bf16.msra.mxu0 %v1814
    %1832 = vmatprep.subr.bf16.mxu0 0
    %1833 = vmatpush2.bf16.msra.mxu0 0
    %1834 = vmatprep.subr.bf16.mxu0 0
    %1835 = vmatpush2.bf16.msra.mxu0 0
    %1836 = vmatprep.subr.bf16.mxu0 0
    %1837 = vmatpush2.bf16.msra.mxu0 0
    %1838 = vmatprep.subr.bf16.mxu0 0
    %1839 = vmatpush2.bf16.msra.mxu0 0
    %1840 = vmatprep.subr.bf16.mxu0 0
    %1841 = vmatpush2.bf16.msra.mxu0 0
    %1842 = vmatprep.subr.bf16.mxu0 0
    %1843 = vmatpush2.bf16.msra.mxu0 0
    %1844 = vmatprep.subr.bf16.mxu0 0
    %1845 = vmatpush2.bf16.msra.mxu0 0
    %1846 = vmatprep.subr.bf16.mxu0 0
    %1847 = vmatpush2.bf16.msra.mxu0 0
    %1848 = vmatprep.mubr.bf16.mxu0 0
    %1849 = vmatmul.mubr.bf16.gmra.mxu0 %v1811
    %v1850 = vpop.f32.mrf.mxu0
    %v1851 = vadd.f32 0.0, %v1850
    %v1852 = vpop.f32.mrf.mxu0
    %v1853 = vpop.f32.mrf.mxu0
    %v1854 = vpop.f32.mrf.mxu0
    %1855 = vdwg.mxu0
    %1856 = vrot.lane.b32.xlu0 %v346, 112
    %v1857 = vpop.permute.xlu0 %1856
    %v1859 = vsel %vm318, %v1322, 0
    %v1862 = vsel %vm1332, %v1857, 0
    %1864 = vmatprep.subr.bf16.mxu0 0
    %1865 = vmatpush1.bf16.msra.mxu0 0
    %1866 = vmatprep.subr.bf16.mxu0 0
    %1867 = vmatpush1.bf16.msra.mxu0 0
    %1868 = vmatprep.subr.bf16.mxu0 0
    %1869 = vmatpush1.bf16.msra.mxu0 0
    %1870 = vmatprep.subr.bf16.mxu0 0
    %1871 = vmatpush1.bf16.msra.mxu0 0
    %1872 = vmatprep.subr.bf16.mxu0 0
    %1873 = vmatpush1.bf16.msra.mxu0 0
    %1874 = vmatprep.subr.bf16.mxu0 0
    %1875 = vmatpush1.bf16.msra.mxu0 0
    %1876 = vmatprep.subr.bf16.mxu0 0
    %1877 = vmatpush1.bf16.msra.mxu0 0
    %1878 = vmatprep.subr.bf16.mxu0 0
    %1879 = vmatpush1.bf16.msra.mxu0 %v1862
    %1880 = vmatprep.subr.bf16.mxu0 0
    %1881 = vmatpush2.bf16.msra.mxu0 0
    %1882 = vmatprep.subr.bf16.mxu0 0
    %1883 = vmatpush2.bf16.msra.mxu0 0
    %1884 = vmatprep.subr.bf16.mxu0 0
    %1885 = vmatpush2.bf16.msra.mxu0 0
    %1886 = vmatprep.subr.bf16.mxu0 0
    %1887 = vmatpush2.bf16.msra.mxu0 0
    %1888 = vmatprep.subr.bf16.mxu0 0
    %1889 = vmatpush2.bf16.msra.mxu0 0
    %1890 = vmatprep.subr.bf16.mxu0 0
    %1891 = vmatpush2.bf16.msra.mxu0 0
    %1892 = vmatprep.subr.bf16.mxu0 0
    %1893 = vmatpush2.bf16.msra.mxu0 0
    %1894 = vmatprep.subr.bf16.mxu0 0
    %1895 = vmatpush2.bf16.msra.mxu0 0
    %1896 = vmatprep.mubr.bf16.mxu0 0
    %1897 = vmatmul.mubr.bf16.gmra.mxu0 %v1859
    %v1898 = vpop.f32.mrf.mxu0
    %v1899 = vadd.f32 0.0, %v1898
    %v1900 = vpop.f32.mrf.mxu0
    %v1901 = vpop.f32.mrf.mxu0
    %v1902 = vpop.f32.mrf.mxu0
    %1903 = vdwg.mxu0
    %1904 = vrot.lane.b32.xlu0 %v347, 112
    %v1905 = vpop.permute.xlu0 %1904
    %v1907 = vsel %vm318, %v1323, 0
    %v1910 = vsel %vm1332, %v1905, 0
    %1912 = vmatprep.subr.bf16.mxu0 0
    %1913 = vmatpush1.bf16.msra.mxu0 0
    %1914 = vmatprep.subr.bf16.mxu0 0
    %1915 = vmatpush1.bf16.msra.mxu0 0
    %1916 = vmatprep.subr.bf16.mxu0 0
    %1917 = vmatpush1.bf16.msra.mxu0 0
    %1918 = vmatprep.subr.bf16.mxu0 0
    %1919 = vmatpush1.bf16.msra.mxu0 0
    %1920 = vmatprep.subr.bf16.mxu0 0
    %1921 = vmatpush1.bf16.msra.mxu0 0
    %1922 = vmatprep.subr.bf16.mxu0 0
    %1923 = vmatpush1.bf16.msra.mxu0 0
    %1924 = vmatprep.subr.bf16.mxu0 0
    %1925 = vmatpush1.bf16.msra.mxu0 0
    %1926 = vmatprep.subr.bf16.mxu0 0
    %1927 = vmatpush1.bf16.msra.mxu0 %v1910
    %1928 = vmatprep.subr.bf16.mxu0 0
    %1929 = vmatpush2.bf16.msra.mxu0 0
    %1930 = vmatprep.subr.bf16.mxu0 0
    %1931 = vmatpush2.bf16.msra.mxu0 0
    %1932 = vmatprep.subr.bf16.mxu0 0
    %1933 = vmatpush2.bf16.msra.mxu0 0
    %1934 = vmatprep.subr.bf16.mxu0 0
    %1935 = vmatpush2.bf16.msra.mxu0 0
    %1936 = vmatprep.subr.bf16.mxu0 0
    %1937 = vmatpush2.bf16.msra.mxu0 0
    %1938 = vmatprep.subr.bf16.mxu0 0
    %1939 = vmatpush2.bf16.msra.mxu0 0
    %1940 = vmatprep.subr.bf16.mxu0 0
    %1941 = vmatpush2.bf16.msra.mxu0 0
    %1942 = vmatprep.subr.bf16.mxu0 0
    %1943 = vmatpush2.bf16.msra.mxu0 0
    %1944 = vmatprep.mubr.bf16.mxu0 0
    %1945 = vmatmul.mubr.bf16.gmra.mxu0 %v1907
    %v1946 = vpop.f32.mrf.mxu0
    %v1947 = vadd.f32 0.0, %v1946
    %v1948 = vpop.f32.mrf.mxu0
    %v1949 = vpop.f32.mrf.mxu0
    %v1950 = vpop.f32.mrf.mxu0
    %1951 = vdwg.mxu0
    %1952 = vrot.lane.b32.xlu0 %v348, 112
    %v1953 = vpop.permute.xlu0 %1952
    %v1955 = vsel %vm318, %v1324, 0
    %v1958 = vsel %vm1332, %v1953, 0
    %1960 = vmatprep.subr.bf16.mxu0 0
    %1961 = vmatpush1.bf16.msra.mxu0 0
    %1962 = vmatprep.subr.bf16.mxu0 0
    %1963 = vmatpush1.bf16.msra.mxu0 0
    %1964 = vmatprep.subr.bf16.mxu0 0
    %1965 = vmatpush1.bf16.msra.mxu0 0
    %1966 = vmatprep.subr.bf16.mxu0 0
    %1967 = vmatpush1.bf16.msra.mxu0 0
    %1968 = vmatprep.subr.bf16.mxu0 0
    %1969 = vmatpush1.bf16.msra.mxu0 0
    %1970 = vmatprep.subr.bf16.mxu0 0
    %1971 = vmatpush1.bf16.msra.mxu0 0
    %1972 = vmatprep.subr.bf16.mxu0 0
    %1973 = vmatpush1.bf16.msra.mxu0 0
    %1974 = vmatprep.subr.bf16.mxu0 0
    %1975 = vmatpush1.bf16.msra.mxu0 %v1958
    %1976 = vmatprep.subr.bf16.mxu0 0
    %1977 = vmatpush2.bf16.msra.mxu0 0
    %1978 = vmatprep.subr.bf16.mxu0 0
    %1979 = vmatpush2.bf16.msra.mxu0 0
    %1980 = vmatprep.subr.bf16.mxu0 0
    %1981 = vmatpush2.bf16.msra.mxu0 0
    %1982 = vmatprep.subr.bf16.mxu0 0
    %1983 = vmatpush2.bf16.msra.mxu0 0
    %1984 = vmatprep.subr.bf16.mxu0 0
    %1985 = vmatpush2.bf16.msra.mxu0 0
    %1986 = vmatprep.subr.bf16.mxu0 0
    %1987 = vmatpush2.bf16.msra.mxu0 0
    %1988 = vmatprep.subr.bf16.mxu0 0
    %1989 = vmatpush2.bf16.msra.mxu0 0
    %1990 = vmatprep.subr.bf16.mxu0 0
    %1991 = vmatpush2.bf16.msra.mxu0 0
    %1992 = vmatprep.mubr.bf16.mxu0 0
    %1993 = vmatmul.mubr.bf16.gmra.mxu0 %v1955
    %v1994 = vpop.f32.mrf.mxu0
    %v1995 = vadd.f32 0.0, %v1994
    %v1996 = vpop.f32.mrf.mxu0
    %v1997 = vpop.f32.mrf.mxu0
    %v1998 = vpop.f32.mrf.mxu0
    %1999 = vdwg.mxu0
    %2000 = vrot.lane.b32.xlu0 %v349, 112
    %v2001 = vpop.permute.xlu0 %2000
    %v2003 = vsel %vm318, %v1325, 0
    %v2006 = vsel %vm1332, %v2001, 0
    %2008 = vmatprep.subr.bf16.mxu0 0
    %2009 = vmatpush1.bf16.msra.mxu0 0
    %2010 = vmatprep.subr.bf16.mxu0 0
    %2011 = vmatpush1.bf16.msra.mxu0 0
    %2012 = vmatprep.subr.bf16.mxu0 0
    %2013 = vmatpush1.bf16.msra.mxu0 0
    %2014 = vmatprep.subr.bf16.mxu0 0
    %2015 = vmatpush1.bf16.msra.mxu0 0
    %2016 = vmatprep.subr.bf16.mxu0 0
    %2017 = vmatpush1.bf16.msra.mxu0 0
    %2018 = vmatprep.subr.bf16.mxu0 0
    %2019 = vmatpush1.bf16.msra.mxu0 0
    %2020 = vmatprep.subr.bf16.mxu0 0
    %2021 = vmatpush1.bf16.msra.mxu0 0
    %2022 = vmatprep.subr.bf16.mxu0 0
    %2023 = vmatpush1.bf16.msra.mxu0 %v2006
    %2024 = vmatprep.subr.bf16.mxu0 0
    %2025 = vmatpush2.bf16.msra.mxu0 0
    %2026 = vmatprep.subr.bf16.mxu0 0
    %2027 = vmatpush2.bf16.msra.mxu0 0
    %2028 = vmatprep.subr.bf16.mxu0 0
    %2029 = vmatpush2.bf16.msra.mxu0 0
    %2030 = vmatprep.subr.bf16.mxu0 0
    %2031 = vmatpush2.bf16.msra.mxu0 0
    %2032 = vmatprep.subr.bf16.mxu0 0
    %2033 = vmatpush2.bf16.msra.mxu0 0
    %2034 = vmatprep.subr.bf16.mxu0 0
    %2035 = vmatpush2.bf16.msra.mxu0 0
    %2036 = vmatprep.subr.bf16.mxu0 0
    %2037 = vmatpush2.bf16.msra.mxu0 0
    %2038 = vmatprep.subr.bf16.mxu0 0
    %2039 = vmatpush2.bf16.msra.mxu0 0
    %2040 = vmatprep.mubr.bf16.mxu0 0
    %2041 = vmatmul.mubr.bf16.gmra.mxu0 %v2003
    %v2042 = vpop.f32.mrf.mxu0
    %v2043 = vadd.f32 0.0, %v2042
    %v2044 = vpop.f32.mrf.mxu0
    %v2045 = vpop.f32.mrf.mxu0
    %v2046 = vpop.f32.mrf.mxu0
    %2047 = vdwg.mxu0
    %2048 = vrot.lane.b32.xlu0 %v350, 112
    %v2049 = vpop.permute.xlu0 %2048
    %v2051 = vsel %vm318, %v1326, 0
    %v2054 = vsel %vm1332, %v2049, 0
    %2056 = vmatprep.subr.bf16.mxu0 0
    %2057 = vmatpush1.bf16.msra.mxu0 0
    %2058 = vmatprep.subr.bf16.mxu0 0
    %2059 = vmatpush1.bf16.msra.mxu0 0
    %2060 = vmatprep.subr.bf16.mxu0 0
    %2061 = vmatpush1.bf16.msra.mxu0 0
    %2062 = vmatprep.subr.bf16.mxu0 0
    %2063 = vmatpush1.bf16.msra.mxu0 0
    %2064 = vmatprep.subr.bf16.mxu0 0
    %2065 = vmatpush1.bf16.msra.mxu0 0
    %2066 = vmatprep.subr.bf16.mxu0 0
    %2067 = vmatpush1.bf16.msra.mxu0 0
    %2068 = vmatprep.subr.bf16.mxu0 0
    %2069 = vmatpush1.bf16.msra.mxu0 0
    %2070 = vmatprep.subr.bf16.mxu0 0
    %2071 = vmatpush1.bf16.msra.mxu0 %v2054
    %2072 = vmatprep.subr.bf16.mxu0 0
    %2073 = vmatpush2.bf16.msra.mxu0 0
    %2074 = vmatprep.subr.bf16.mxu0 0
    %2075 = vmatpush2.bf16.msra.mxu0 0
    %2076 = vmatprep.subr.bf16.mxu0 0
    %2077 = vmatpush2.bf16.msra.mxu0 0
    %2078 = vmatprep.subr.bf16.mxu0 0
    %2079 = vmatpush2.bf16.msra.mxu0 0
    %2080 = vmatprep.subr.bf16.mxu0 0
    %2081 = vmatpush2.bf16.msra.mxu0 0
    %2082 = vmatprep.subr.bf16.mxu0 0
    %2083 = vmatpush2.bf16.msra.mxu0 0
    %2084 = vmatprep.subr.bf16.mxu0 0
    %2085 = vmatpush2.bf16.msra.mxu0 0
    %2086 = vmatprep.subr.bf16.mxu0 0
    %2087 = vmatpush2.bf16.msra.mxu0 0
    %2088 = vmatprep.mubr.bf16.mxu0 0
    %2089 = vmatmul.mubr.bf16.gmra.mxu0 %v2051
    %v2090 = vpop.f32.mrf.mxu0
    %v2091 = vadd.f32 0.0, %v2090
    %v2092 = vpop.f32.mrf.mxu0
    %v2093 = vpop.f32.mrf.mxu0
    %v2094 = vpop.f32.mrf.mxu0
    %2095 = vdwg.mxu0
    %v2096 = vpack.c.bf16 %v1419, %v1371
    %v2097 = vpack.c.bf16 %v1515, %v1467
    %v2098 = vpack.c.bf16 %v1611, %v1563
    %v2099 = vpack.c.bf16 %v1707, %v1659
    %v2100 = vpack.c.bf16 %v1803, %v1755
    %v2101 = vpack.c.bf16 %v1899, %v1851
    %v2102 = vpack.c.bf16 %v1995, %v1947
    %v2103 = vpack.c.bf16 %v2091, %v2043
    %v2104 = vld [vmem:[#allocation5] sm:$0xf]
    %v2105 = vld [vmem:[#allocation5 + $0x4] sm:$0xf]
    %v2106 = vld [vmem:[#allocation5 + $0x8] sm:$0xf]
    %v2107 = vld [vmem:[#allocation5 + $0xc] sm:$0xf]
    %v2108 = vld [vmem:[#allocation5 + $0x10] sm:$0xf]
    %v2109 = vld [vmem:[#allocation5 + $0x14] sm:$0xf]
    %v2110 = vld [vmem:[#allocation5 + $0x18] sm:$0xf]
    %v2111 = vld [vmem:[#allocation5 + $0x1c] sm:$0xf]
    %v2113 = vsel %vm318, %v2096, 0
    %v2116 = vsel %vm1332, %v2104, 0
    %2118 = vmatprep.subr.bf16.mxu0 0
    %2119 = vmatpush1.bf16.msra.mxu0 0
    %2120 = vmatprep.subr.bf16.mxu0 0
    %2121 = vmatpush1.bf16.msra.mxu0 0
    %2122 = vmatprep.subr.bf16.mxu0 0
    %2123 = vmatpush1.bf16.msra.mxu0 0
    %2124 = vmatprep.subr.bf16.mxu0 0
    %2125 = vmatpush1.bf16.msra.mxu0 0
    %2126 = vmatprep.subr.bf16.mxu0 0
    %2127 = vmatpush1.bf16.msra.mxu0 0
    %2128 = vmatprep.subr.bf16.mxu0 0
    %2129 = vmatpush1.bf16.msra.mxu0 0
    %2130 = vmatprep.subr.bf16.mxu0 0
    %2131 = vmatpush1.bf16.msra.mxu0 0
    %2132 = vmatprep.subr.bf16.mxu0 0
    %2133 = vmatpush1.bf16.msra.mxu0 %v2116
    %2134 = vmatprep.subr.bf16.mxu0 0
    %2135 = vmatpush2.bf16.msra.mxu0 0
    %2136 = vmatprep.subr.bf16.mxu0 0
    %2137 = vmatpush2.bf16.msra.mxu0 0
    %2138 = vmatprep.subr.bf16.mxu0 0
    %2139 = vmatpush2.bf16.msra.mxu0 0
    %2140 = vmatprep.subr.bf16.mxu0 0
    %2141 = vmatpush2.bf16.msra.mxu0 0
    %2142 = vmatprep.subr.bf16.mxu0 0
    %2143 = vmatpush2.bf16.msra.mxu0 0
    %2144 = vmatprep.subr.bf16.mxu0 0
    %2145 = vmatpush2.bf16.msra.mxu0 0
    %2146 = vmatprep.subr.bf16.mxu0 0
    %2147 = vmatpush2.bf16.msra.mxu0 0
    %2148 = vmatprep.subr.bf16.mxu0 0
    %2149 = vmatpush2.bf16.msra.mxu0 0
    %2150 = vmatprep.mubr.bf16.mxu0 0
    %2151 = vmatmul.mubr.bf16.gmra.mxu0 %v2113
    %v2152 = vpop.f32.mrf.mxu0
    %v2153 = vadd.f32 0.0, %v2152
    %v2154 = vpop.f32.mrf.mxu0
    %v2155 = vpop.f32.mrf.mxu0
    %v2156 = vadd.f32 0.0, %v2155
    %v2157 = vpop.f32.mrf.mxu0
    %2158 = vdwg.mxu0
    %v2160 = vsel %vm318, %v2097, 0
    %v2163 = vsel %vm1332, %v2105, 0
    %2165 = vmatprep.subr.bf16.mxu0 0
    %2166 = vmatpush1.bf16.msra.mxu0 0
    %2167 = vmatprep.subr.bf16.mxu0 0
    %2168 = vmatpush1.bf16.msra.mxu0 0
    %2169 = vmatprep.subr.bf16.mxu0 0
    %2170 = vmatpush1.bf16.msra.mxu0 0
    %2171 = vmatprep.subr.bf16.mxu0 0
    %2172 = vmatpush1.bf16.msra.mxu0 0
    %2173 = vmatprep.subr.bf16.mxu0 0
    %2174 = vmatpush1.bf16.msra.mxu0 0
    %2175 = vmatprep.subr.bf16.mxu0 0
    %2176 = vmatpush1.bf16.msra.mxu0 0
    %2177 = vmatprep.subr.bf16.mxu0 0
    %2178 = vmatpush1.bf16.msra.mxu0 0
    %2179 = vmatprep.subr.bf16.mxu0 0
    %2180 = vmatpush1.bf16.msra.mxu0 %v2163
    %2181 = vmatprep.subr.bf16.mxu0 0
    %2182 = vmatpush2.bf16.msra.mxu0 0
    %2183 = vmatprep.subr.bf16.mxu0 0
    %2184 = vmatpush2.bf16.msra.mxu0 0
    %2185 = vmatprep.subr.bf16.mxu0 0
    %2186 = vmatpush2.bf16.msra.mxu0 0
    %2187 = vmatprep.subr.bf16.mxu0 0
    %2188 = vmatpush2.bf16.msra.mxu0 0
    %2189 = vmatprep.subr.bf16.mxu0 0
    %2190 = vmatpush2.bf16.msra.mxu0 0
    %2191 = vmatprep.subr.bf16.mxu0 0
    %2192 = vmatpush2.bf16.msra.mxu0 0
    %2193 = vmatprep.subr.bf16.mxu0 0
    %2194 = vmatpush2.bf16.msra.mxu0 0
    %2195 = vmatprep.subr.bf16.mxu0 0
    %2196 = vmatpush2.bf16.msra.mxu0 0
    %2197 = vmatprep.mubr.bf16.mxu0 0
    %2198 = vmatmul.mubr.bf16.gmra.mxu0 %v2160
    %v2199 = vpop.f32.mrf.mxu0
    %v2200 = vadd.f32 0.0, %v2199
    %v2201 = vpop.f32.mrf.mxu0
    %v2202 = vpop.f32.mrf.mxu0
    %v2203 = vadd.f32 0.0, %v2202
    %v2204 = vpop.f32.mrf.mxu0
    %2205 = vdwg.mxu0
    %v2207 = vsel %vm318, %v2098, 0
    %v2210 = vsel %vm1332, %v2106, 0
    %2212 = vmatprep.subr.bf16.mxu0 0
    %2213 = vmatpush1.bf16.msra.mxu0 0
    %2214 = vmatprep.subr.bf16.mxu0 0
    %2215 = vmatpush1.bf16.msra.mxu0 0
    %2216 = vmatprep.subr.bf16.mxu0 0
    %2217 = vmatpush1.bf16.msra.mxu0 0
    %2218 = vmatprep.subr.bf16.mxu0 0
    %2219 = vmatpush1.bf16.msra.mxu0 0
    %2220 = vmatprep.subr.bf16.mxu0 0
    %2221 = vmatpush1.bf16.msra.mxu0 0
    %2222 = vmatprep.subr.bf16.mxu0 0
    %2223 = vmatpush1.bf16.msra.mxu0 0
    %2224 = vmatprep.subr.bf16.mxu0 0
    %2225 = vmatpush1.bf16.msra.mxu0 0
    %2226 = vmatprep.subr.bf16.mxu0 0
    %2227 = vmatpush1.bf16.msra.mxu0 %v2210
    %2228 = vmatprep.subr.bf16.mxu0 0
    %2229 = vmatpush2.bf16.msra.mxu0 0
    %2230 = vmatprep.subr.bf16.mxu0 0
    %2231 = vmatpush2.bf16.msra.mxu0 0
    %2232 = vmatprep.subr.bf16.mxu0 0
    %2233 = vmatpush2.bf16.msra.mxu0 0
    %2234 = vmatprep.subr.bf16.mxu0 0
    %2235 = vmatpush2.bf16.msra.mxu0 0
    %2236 = vmatprep.subr.bf16.mxu0 0
    %2237 = vmatpush2.bf16.msra.mxu0 0
    %2238 = vmatprep.subr.bf16.mxu0 0
    %2239 = vmatpush2.bf16.msra.mxu0 0
    %2240 = vmatprep.subr.bf16.mxu0 0
    %2241 = vmatpush2.bf16.msra.mxu0 0
    %2242 = vmatprep.subr.bf16.mxu0 0
    %2243 = vmatpush2.bf16.msra.mxu0 0
    %2244 = vmatprep.mubr.bf16.mxu0 0
    %2245 = vmatmul.mubr.bf16.gmra.mxu0 %v2207
    %v2246 = vpop.f32.mrf.mxu0
    %v2247 = vadd.f32 0.0, %v2246
    %v2248 = vpop.f32.mrf.mxu0
    %v2249 = vpop.f32.mrf.mxu0
    %v2250 = vadd.f32 0.0, %v2249
    %v2251 = vpop.f32.mrf.mxu0
    %2252 = vdwg.mxu0
    %v2254 = vsel %vm318, %v2099, 0
    %v2257 = vsel %vm1332, %v2107, 0
    %2259 = vmatprep.subr.bf16.mxu0 0
    %2260 = vmatpush1.bf16.msra.mxu0 0
    %2261 = vmatprep.subr.bf16.mxu0 0
    %2262 = vmatpush1.bf16.msra.mxu0 0
    %2263 = vmatprep.subr.bf16.mxu0 0
    %2264 = vmatpush1.bf16.msra.mxu0 0
    %2265 = vmatprep.subr.bf16.mxu0 0
    %2266 = vmatpush1.bf16.msra.mxu0 0
    %2267 = vmatprep.subr.bf16.mxu0 0
    %2268 = vmatpush1.bf16.msra.mxu0 0
    %2269 = vmatprep.subr.bf16.mxu0 0
    %2270 = vmatpush1.bf16.msra.mxu0 0
    %2271 = vmatprep.subr.bf16.mxu0 0
    %2272 = vmatpush1.bf16.msra.mxu0 0
    %2273 = vmatprep.subr.bf16.mxu0 0
    %2274 = vmatpush1.bf16.msra.mxu0 %v2257
    %2275 = vmatprep.subr.bf16.mxu0 0
    %2276 = vmatpush2.bf16.msra.mxu0 0
    %2277 = vmatprep.subr.bf16.mxu0 0
    %2278 = vmatpush2.bf16.msra.mxu0 0
    %2279 = vmatprep.subr.bf16.mxu0 0
    %2280 = vmatpush2.bf16.msra.mxu0 0
    %2281 = vmatprep.subr.bf16.mxu0 0
    %2282 = vmatpush2.bf16.msra.mxu0 0
    %2283 = vmatprep.subr.bf16.mxu0 0
    %2284 = vmatpush2.bf16.msra.mxu0 0
    %2285 = vmatprep.subr.bf16.mxu0 0
    %2286 = vmatpush2.bf16.msra.mxu0 0
    %2287 = vmatprep.subr.bf16.mxu0 0
    %2288 = vmatpush2.bf16.msra.mxu0 0
    %2289 = vmatprep.subr.bf16.mxu0 0
    %2290 = vmatpush2.bf16.msra.mxu0 0
    %2291 = vmatprep.mubr.bf16.mxu0 0
    %2292 = vmatmul.mubr.bf16.gmra.mxu0 %v2254
    %v2293 = vpop.f32.mrf.mxu0
    %v2294 = vadd.f32 0.0, %v2293
    %v2295 = vpop.f32.mrf.mxu0
    %v2296 = vpop.f32.mrf.mxu0
    %v2297 = vadd.f32 0.0, %v2296
    %v2298 = vpop.f32.mrf.mxu0
    %2299 = vdwg.mxu0
    %v2301 = vsel %vm318, %v2100, 0
    %v2304 = vsel %vm1332, %v2108, 0
    %2306 = vmatprep.subr.bf16.mxu0 0
    %2307 = vmatpush1.bf16.msra.mxu0 0
    %2308 = vmatprep.subr.bf16.mxu0 0
    %2309 = vmatpush1.bf16.msra.mxu0 0
    %2310 = vmatprep.subr.bf16.mxu0 0
    %2311 = vmatpush1.bf16.msra.mxu0 0
    %2312 = vmatprep.subr.bf16.mxu0 0
    %2313 = vmatpush1.bf16.msra.mxu0 0
    %2314 = vmatprep.subr.bf16.mxu0 0
    %2315 = vmatpush1.bf16.msra.mxu0 0
    %2316 = vmatprep.subr.bf16.mxu0 0
    %2317 = vmatpush1.bf16.msra.mxu0 0
    %2318 = vmatprep.subr.bf16.mxu0 0
    %2319 = vmatpush1.bf16.msra.mxu0 0
    %2320 = vmatprep.subr.bf16.mxu0 0
    %2321 = vmatpush1.bf16.msra.mxu0 %v2304
    %2322 = vmatprep.subr.bf16.mxu0 0
    %2323 = vmatpush2.bf16.msra.mxu0 0
    %2324 = vmatprep.subr.bf16.mxu0 0
    %2325 = vmatpush2.bf16.msra.mxu0 0
    %2326 = vmatprep.subr.bf16.mxu0 0
    %2327 = vmatpush2.bf16.msra.mxu0 0
    %2328 = vmatprep.subr.bf16.mxu0 0
    %2329 = vmatpush2.bf16.msra.mxu0 0
    %2330 = vmatprep.subr.bf16.mxu0 0
    %2331 = vmatpush2.bf16.msra.mxu0 0
    %2332 = vmatprep.subr.bf16.mxu0 0
    %2333 = vmatpush2.bf16.msra.mxu0 0
    %2334 = vmatprep.subr.bf16.mxu0 0
    %2335 = vmatpush2.bf16.msra.mxu0 0
    %2336 = vmatprep.subr.bf16.mxu0 0
    %2337 = vmatpush2.bf16.msra.mxu0 0
    %2338 = vmatprep.mubr.bf16.mxu0 0
    %2339 = vmatmul.mubr.bf16.gmra.mxu0 %v2301
    %v2340 = vpop.f32.mrf.mxu0
    %v2341 = vadd.f32 0.0, %v2340
    %v2342 = vpop.f32.mrf.mxu0
    %v2343 = vpop.f32.mrf.mxu0
    %v2344 = vadd.f32 0.0, %v2343
    %v2345 = vpop.f32.mrf.mxu0
    %2346 = vdwg.mxu0
    %v2348 = vsel %vm318, %v2101, 0
    %v2351 = vsel %vm1332, %v2109, 0
    %2353 = vmatprep.subr.bf16.mxu0 0
    %2354 = vmatpush1.bf16.msra.mxu0 0
    %2355 = vmatprep.subr.bf16.mxu0 0
    %2356 = vmatpush1.bf16.msra.mxu0 0
    %2357 = vmatprep.subr.bf16.mxu0 0
    %2358 = vmatpush1.bf16.msra.mxu0 0
    %2359 = vmatprep.subr.bf16.mxu0 0
    %2360 = vmatpush1.bf16.msra.mxu0 0
    %2361 = vmatprep.subr.bf16.mxu0 0
    %2362 = vmatpush1.bf16.msra.mxu0 0
    %2363 = vmatprep.subr.bf16.mxu0 0
    %2364 = vmatpush1.bf16.msra.mxu0 0
    %2365 = vmatprep.subr.bf16.mxu0 0
    %2366 = vmatpush1.bf16.msra.mxu0 0
    %2367 = vmatprep.subr.bf16.mxu0 0
    %2368 = vmatpush1.bf16.msra.mxu0 %v2351
    %2369 = vmatprep.subr.bf16.mxu0 0
    %2370 = vmatpush2.bf16.msra.mxu0 0
    %2371 = vmatprep.subr.bf16.mxu0 0
    %2372 = vmatpush2.bf16.msra.mxu0 0
    %2373 = vmatprep.subr.bf16.mxu0 0
    %2374 = vmatpush2.bf16.msra.mxu0 0
    %2375 = vmatprep.subr.bf16.mxu0 0
    %2376 = vmatpush2.bf16.msra.mxu0 0
    %2377 = vmatprep.subr.bf16.mxu0 0
    %2378 = vmatpush2.bf16.msra.mxu0 0
    %2379 = vmatprep.subr.bf16.mxu0 0
    %2380 = vmatpush2.bf16.msra.mxu0 0
    %2381 = vmatprep.subr.bf16.mxu0 0
    %2382 = vmatpush2.bf16.msra.mxu0 0
    %2383 = vmatprep.subr.bf16.mxu0 0
    %2384 = vmatpush2.bf16.msra.mxu0 0
    %2385 = vmatprep.mubr.bf16.mxu0 0
    %2386 = vmatmul.mubr.bf16.gmra.mxu0 %v2348
    %v2387 = vpop.f32.mrf.mxu0
    %v2388 = vadd.f32 0.0, %v2387
    %v2389 = vpop.f32.mrf.mxu0
    %v2390 = vpop.f32.mrf.mxu0
    %v2391 = vadd.f32 0.0, %v2390
    %v2392 = vpop.f32.mrf.mxu0
    %2393 = vdwg.mxu0
    %v2395 = vsel %vm318, %v2102, 0
    %v2398 = vsel %vm1332, %v2110, 0
    %2400 = vmatprep.subr.bf16.mxu0 0
    %2401 = vmatpush1.bf16.msra.mxu0 0
    %2402 = vmatprep.subr.bf16.mxu0 0
    %2403 = vmatpush1.bf16.msra.mxu0 0
    %2404 = vmatprep.subr.bf16.mxu0 0
    %2405 = vmatpush1.bf16.msra.mxu0 0
    %2406 = vmatprep.subr.bf16.mxu0 0
    %2407 = vmatpush1.bf16.msra.mxu0 0
    %2408 = vmatprep.subr.bf16.mxu0 0
    %2409 = vmatpush1.bf16.msra.mxu0 0
    %2410 = vmatprep.subr.bf16.mxu0 0
    %2411 = vmatpush1.bf16.msra.mxu0 0
    %2412 = vmatprep.subr.bf16.mxu0 0
    %2413 = vmatpush1.bf16.msra.mxu0 0
    %2414 = vmatprep.subr.bf16.mxu0 0
    %2415 = vmatpush1.bf16.msra.mxu0 %v2398
    %2416 = vmatprep.subr.bf16.mxu0 0
    %2417 = vmatpush2.bf16.msra.mxu0 0
    %2418 = vmatprep.subr.bf16.mxu0 0
    %2419 = vmatpush2.bf16.msra.mxu0 0
    %2420 = vmatprep.subr.bf16.mxu0 0
    %2421 = vmatpush2.bf16.msra.mxu0 0
    %2422 = vmatprep.subr.bf16.mxu0 0
    %2423 = vmatpush2.bf16.msra.mxu0 0
    %2424 = vmatprep.subr.bf16.mxu0 0
    %2425 = vmatpush2.bf16.msra.mxu0 0
    %2426 = vmatprep.subr.bf16.mxu0 0
    %2427 = vmatpush2.bf16.msra.mxu0 0
    %2428 = vmatprep.subr.bf16.mxu0 0
    %2429 = vmatpush2.bf16.msra.mxu0 0
    %2430 = vmatprep.subr.bf16.mxu0 0
    %2431 = vmatpush2.bf16.msra.mxu0 0
    %2432 = vmatprep.mubr.bf16.mxu0 0
    %2433 = vmatmul.mubr.bf16.gmra.mxu0 %v2395
    %v2434 = vpop.f32.mrf.mxu0
    %v2435 = vadd.f32 0.0, %v2434
    %v2436 = vpop.f32.mrf.mxu0
    %v2437 = vpop.f32.mrf.mxu0
    %v2438 = vadd.f32 0.0, %v2437
    %v2439 = vpop.f32.mrf.mxu0
    %2440 = vdwg.mxu0
    %v2442 = vsel %vm318, %v2103, 0
    %v2445 = vsel %vm1332, %v2111, 0
    %2447 = vmatprep.subr.bf16.mxu0 0
    %2448 = vmatpush1.bf16.msra.mxu0 0
    %2449 = vmatprep.subr.bf16.mxu0 0
    %2450 = vmatpush1.bf16.msra.mxu0 0
    %2451 = vmatprep.subr.bf16.mxu0 0
    %2452 = vmatpush1.bf16.msra.mxu0 0
    %2453 = vmatprep.subr.bf16.mxu0 0
    %2454 = vmatpush1.bf16.msra.mxu0 0
    %2455 = vmatprep.subr.bf16.mxu0 0
    %2456 = vmatpush1.bf16.msra.mxu0 0
    %2457 = vmatprep.subr.bf16.mxu0 0
    %2458 = vmatpush1.bf16.msra.mxu0 0
    %2459 = vmatprep.subr.bf16.mxu0 0
    %2460 = vmatpush1.bf16.msra.mxu0 0
    %2461 = vmatprep.subr.bf16.mxu0 0
    %2462 = vmatpush1.bf16.msra.mxu0 %v2445
    %2463 = vmatprep.subr.bf16.mxu0 0
    %2464 = vmatpush2.bf16.msra.mxu0 0
    %2465 = vmatprep.subr.bf16.mxu0 0
    %2466 = vmatpush2.bf16.msra.mxu0 0
    %2467 = vmatprep.subr.bf16.mxu0 0
    %2468 = vmatpush2.bf16.msra.mxu0 0
    %2469 = vmatprep.subr.bf16.mxu0 0
    %2470 = vmatpush2.bf16.msra.mxu0 0
    %2471 = vmatprep.subr.bf16.mxu0 0
    %2472 = vmatpush2.bf16.msra.mxu0 0
    %2473 = vmatprep.subr.bf16.mxu0 0
    %2474 = vmatpush2.bf16.msra.mxu0 0
    %2475 = vmatprep.subr.bf16.mxu0 0
    %2476 = vmatpush2.bf16.msra.mxu0 0
    %2477 = vmatprep.subr.bf16.mxu0 0
    %2478 = vmatpush2.bf16.msra.mxu0 0
    %2479 = vmatprep.mubr.bf16.mxu0 0
    %2480 = vmatmul.mubr.bf16.gmra.mxu0 %v2442
    %v2481 = vpop.f32.mrf.mxu0
    %v2482 = vadd.f32 0.0, %v2481
    %v2483 = vpop.f32.mrf.mxu0
    %v2484 = vpop.f32.mrf.mxu0
    %v2485 = vadd.f32 0.0, %v2484
    %v2486 = vpop.f32.mrf.mxu0
    %2487 = vdwg.mxu0
    %v2488 = vsel %vm235, %v2153, 0.0
    %v2489 = vsel %vm235, %v2200, 0.0
    %v2490 = vadd.f32 %v2488, %v2489
    %v2491 = vsel %vm235, %v2247, 0.0
    %v2492 = vadd.f32 %v2490, %v2491
    %v2493 = vsel %vm235, %v2294, 0.0
    %v2494 = vadd.f32 %v2492, %v2493
    %v2495 = vsel %vm235, %v2341, 0.0
    %v2496 = vadd.f32 %v2494, %v2495
    %v2497 = vsel %vm235, %v2388, 0.0
    %v2498 = vadd.f32 %v2496, %v2497
    %v2499 = vsel %vm235, %v2435, 0.0
    %v2500 = vadd.f32 %v2498, %v2499
    %v2501 = vsel %vm235, %v2482, 0.0
    %v2502 = vadd.f32 %v2500, %v2501
    %v2503 = vsel %vm235, %v2156, 0.0
    %v2504 = vsel %vm235, %v2203, 0.0
    %v2505 = vadd.f32 %v2503, %v2504
    %v2506 = vsel %vm235, %v2250, 0.0
    %v2507 = vadd.f32 %v2505, %v2506
    %v2508 = vsel %vm235, %v2297, 0.0
    %v2509 = vadd.f32 %v2507, %v2508
    %v2510 = vsel %vm235, %v2344, 0.0
    %v2511 = vadd.f32 %v2509, %v2510
    %v2512 = vsel %vm235, %v2391, 0.0
    %v2513 = vadd.f32 %v2511, %v2512
    %v2514 = vsel %vm235, %v2438, 0.0
    %v2515 = vadd.f32 %v2513, %v2514
    %v2516 = vsel %vm235, %v2485, 0.0
    %v2517 = vadd.f32 %v2515, %v2516
    %v2518 = vlaneseq
    %v2519 = vshrl.u32 %v2518, 7
    %v2520 = vsub.s32 1, %v2519
    %v2521 = vrot.slane %v80, %v2520
    %v2522 = vadd.f32 %v2502, %v2521
    %v2523 = vadd.f32 %v2517, %v2521
    %v2524 = vrot.slane %v78, 4
    %v2525 = vrot.slane %v79, 4
    %v2528 = vunpack.c.l.bf16 %v2524
    %v2529 = vunpack.c.l.bf16 %v2525
    %v2530 = vadd.f32 %v2522, %v2528
    %v2531 = vadd.f32 %v2523, %v2529
    %v2532 = vsel %vm235, %v2530, 0.0
    %2533 = vadd.xlane.f32.xlu0 %v2532
    %v2534 = vpop.xlane.xlu0 %2533
    %v2535 = vsel %vm235, %v2531, 0.0
    %2536 = vadd.xlane.f32.xlu0 %v2535
    %v2537 = vpop.xlane.xlu0 %2536
    %v2538 = vrcp.pop 64.0
    %v2539 = vmul.f32 %v2534, %v2538
    %v2540 = vmul.f32 %v2537, %v2538
    %v2541 = vsub.f32 %v2530, %v2539
    %v2542 = vsub.f32 %v2531, %v2540
    %v2543 = vmul.f32 %v2541, %v2541
    %v2544 = vmul.f32 %v2542, %v2542
    %v2545 = vsel %vm235, %v2543, 0.0
    %2546 = vadd.xlane.f32.xlu0 %v2545
    %v2547 = vpop.xlane.xlu0 %2546
    %v2548 = vsel %vm235, %v2544, 0.0
    %2549 = vadd.xlane.f32.xlu0 %v2548
    %v2550 = vpop.xlane.xlu0 %2549
    %v2551 = vmul.f32 %v2547, %v2538
    %v2552 = vmul.f32 %v2550, %v2538
    %v2553 = vadd.f32 %v2551, 1e-05
    %v2554 = vadd.f32 %v2552, 1e-05
    %v2555 = vrsqrt.pop %v2553
    %v2556 = vrsqrt.pop %v2554
    %v2557 = vmul.f32 %v2541, %v2555
    %v2558 = vmul.f32 %v2542, %v2556
    %v2559 = vlaneseq
    %v2560 = vshrl.u32 %v2559, 7
    %v2561 = vsub.s32 2, %v2560
    %v2562 = vrot.slane %v80, %v2561
    %v2563 = vmul.f32 %v2557, %v2562
    %v2564 = vmul.f32 %v2558, %v2562
    %v2565 = vlaneseq
    %v2566 = vshrl.u32 %v2565, 7
    %v2567 = vsub.s32 3, %v2566
    %v2568 = vrot.slane %v80, %v2567
    %v2569 = vadd.f32 %v2563, %v2568
    %v2570 = vadd.f32 %v2564, %v2568
    %v2571 = vpack.c.bf16 %v2570, %v2569
    %v2572 = vld [vmem:[#allocation7] sm:$0xff]
    %v2573 = vld [vmem:[#allocation7 + $0x8] sm:$0xff]
    %v2574 = vld [vmem:[#allocation7 + $0x10] sm:$0xff]
    %v2575 = vld [vmem:[#allocation7 + $0x18] sm:$0xff]
    %v2576 = vld [vmem:[#allocation7 + $0x20] sm:$0xff]
    %v2577 = vld [vmem:[#allocation7 + $0x28] sm:$0xff]
    %v2578 = vld [vmem:[#allocation7 + $0x30] sm:$0xff]
    %v2579 = vld [vmem:[#allocation7 + $0x38] sm:$0xff]
    %v2580 = vlaneseq
    %v2581 = vshrl.u32 %v2580, 7
    %v2582 = vsub.s32 0, %v2581
    %v2583 = vrot.slane %v80, %v2582
    %v2584 = vlaneseq
    %v2585 = vshrl.u32 %v2584, 7
    %v2586 = vsub.s32 0, %v2585
    %v2587 = vrot.slane %v81, %v2586
    %v2596 = vunpack.c.l.b16 %v2572
    %v2597 = vunpack.c.h.b16 %v2572
    %v2598 = vunpack.c.l.b16 %v2573
    %v2599 = vunpack.c.h.b16 %v2573
    %v2600 = vunpack.c.l.b16 %v2574
    %v2601 = vunpack.c.h.b16 %v2574
    %v2602 = vunpack.c.l.b16 %v2575
    %v2603 = vunpack.c.h.b16 %v2575
    %v2604 = vunpack.c.l.b16 %v2576
    %v2605 = vunpack.c.h.b16 %v2576
    %v2606 = vunpack.c.l.b16 %v2577
    %v2607 = vunpack.c.h.b16 %v2577
    %v2608 = vunpack.c.l.b16 %v2578
    %v2609 = vunpack.c.h.b16 %v2578
    %v2610 = vunpack.c.l.b16 %v2579
    %v2611 = vunpack.c.h.b16 %v2579
    %v2612 = vpack.c.b16 %v2598, %v2596
    %v2613 = vpack.c.b16 %v2599, %v2597
    %v2614 = vpack.c.b16 %v2602, %v2600
    %v2615 = vpack.c.b16 %v2603, %v2601
    %v2616 = vpack.c.b16 %v2606, %v2604
    %v2617 = vpack.c.b16 %v2607, %v2605
    %v2618 = vpack.c.b16 %v2610, %v2608
    %v2619 = vpack.c.b16 %v2611, %v2609
    %v2629 = vsel %vm235, %v2571, 0
    %2631 = vmatprep.subr.bf16.mxu0 0
    %2632 = vmatpush1.bf16.msra.mxu0 0
    %2633 = vmatprep.subr.bf16.mxu0 0
    %2634 = vmatpush1.bf16.msra.mxu0 0
    %2635 = vmatprep.subr.bf16.mxu0 0
    %2636 = vmatpush1.bf16.msra.mxu0 0
    %2637 = vmatprep.subr.bf16.mxu0 0
    %2638 = vmatpush1.bf16.msra.mxu0 0
    %2639 = vmatprep.subr.bf16.mxu0 %v2619
    %2640 = vmatpush1.bf16.msra.mxu0 %v2618
    %2641 = vmatprep.subr.bf16.mxu0 %v2617
    %2642 = vmatpush1.bf16.msra.mxu0 %v2616
    %2643 = vmatprep.subr.bf16.mxu0 %v2615
    %2644 = vmatpush1.bf16.msra.mxu0 %v2614
    %2645 = vmatprep.subr.bf16.mxu0 %v2613
    %2646 = vmatpush1.bf16.msra.mxu0 %v2612
    %2647 = vmatprep.subr.bf16.mxu0 0
    %2648 = vmatpush2.bf16.msra.mxu0 0
    %2649 = vmatprep.subr.bf16.mxu0 0
    %2650 = vmatpush2.bf16.msra.mxu0 0
    %2651 = vmatprep.subr.bf16.mxu0 0
    %2652 = vmatpush2.bf16.msra.mxu0 0
    %2653 = vmatprep.subr.bf16.mxu0 0
    %2654 = vmatpush2.bf16.msra.mxu0 0
    %2655 = vmatprep.subr.bf16.mxu0 0
    %2656 = vmatpush2.bf16.msra.mxu0 0
    %2657 = vmatprep.subr.bf16.mxu0 0
    %2658 = vmatpush2.bf16.msra.mxu0 0
    %2659 = vmatprep.subr.bf16.mxu0 0
    %2660 = vmatpush2.bf16.msra.mxu0 0
    %2661 = vmatprep.subr.bf16.mxu0 0
    %2662 = vmatpush2.bf16.msra.mxu0 0
    %2663 = vmatprep.mubr.bf16.mxu0 0
    %2664 = vmatmul.mubr.bf16.gmra.mxu0 %v2629
    %v2665 = vpop.f32.mrf.mxu0
    %v2666 = vadd.f32 %v2583, %v2665
    %v2667 = vpop.f32.mrf.mxu0
    %v2668 = vadd.f32 %v2587, %v2667
    %v2669 = vpop.f32.mrf.mxu0
    %v2670 = vadd.f32 %v2583, %v2669
    %v2671 = vpop.f32.mrf.mxu0
    %v2672 = vadd.f32 %v2587, %v2671
    %2673 = vdwg.mxu0
    %v2674 = vxor.u32 %v2666, 2147483648
    %v2675 = vxor.u32 %v2668, 2147483648
    %v2676 = vxor.u32 %v2670, 2147483648
    %v2677 = vxor.u32 %v2672, 2147483648
    %v2678 = vmul.f32 %v2674, 1.442695
    %v2679 = vpow.pop %v2678
    %v2680 = vmul.f32 %v2675, 1.442695
    %v2681 = vpow.pop %v2680
    %v2682 = vmul.f32 %v2676, 1.442695
    %v2683 = vpow.pop %v2682
    %v2684 = vmul.f32 %v2677, 1.442695
    %v2685 = vpow.pop %v2684
    %v2686 = vadd.f32 %v2679, 1.0
    %v2687 = vadd.f32 %v2681, 1.0
    %v2688 = vadd.f32 %v2683, 1.0
    %v2689 = vadd.f32 %v2685, 1.0
    %v2690 = vrcp.pop %v2686
    %v2691 = vmul.f32 1.0, %v2690
    %v2692 = vrcp.pop %v2687
    %v2693 = vmul.f32 1.0, %v2692
    %v2694 = vrcp.pop %v2688
    %v2695 = vmul.f32 1.0, %v2694
    %v2696 = vrcp.pop %v2689
    %v2697 = vmul.f32 1.0, %v2696
    %v2698 = vmul.f32 %v2666, %v2691
    %v2699 = vmul.f32 %v2668, %v2693
    %v2700 = vmul.f32 %v2670, %v2695
    %v2701 = vmul.f32 %v2672, %v2697
    %v2702 = vpack.c.bf16 %v2700, %v2698
    %v2703 = vpack.c.bf16 %v2701, %v2699
    %v2704 = vld [vmem:[%s4] sm:$0xf]
    %v2705 = vld [vmem:[%s4 + $0x4] sm:$0xf]
    %v2706 = vld [vmem:[%s4 + $0x8] sm:$0xf]
    %v2707 = vld [vmem:[%s4 + $0xc] sm:$0xf]
    %v2708 = vld [vmem:[%s4 + $0x10] sm:$0xf]
    %v2709 = vld [vmem:[%s4 + $0x14] sm:$0xf]
    %v2710 = vld [vmem:[%s4 + $0x18] sm:$0xf]
    %v2711 = vld [vmem:[%s4 + $0x1c] sm:$0xf]
    %v2712 = vld [vmem:[%s4 + $0x20] sm:$0xf]
    %v2713 = vld [vmem:[%s4 + $0x24] sm:$0xf]
    %v2714 = vld [vmem:[%s4 + $0x28] sm:$0xf]
    %v2715 = vld [vmem:[%s4 + $0x2c] sm:$0xf]
    %v2716 = vld [vmem:[%s4 + $0x30] sm:$0xf]
    %v2717 = vld [vmem:[%s4 + $0x34] sm:$0xf]
    %v2718 = vld [vmem:[%s4 + $0x38] sm:$0xf]
    %v2719 = vld [vmem:[%s4 + $0x3c] sm:$0xf]
    %v2720 = vld [vmem:[%s4 + $0x40] sm:$0xf]
    %v2721 = vld [vmem:[%s4 + $0x44] sm:$0xf]
    %v2722 = vld [vmem:[%s4 + $0x48] sm:$0xf]
    %v2723 = vld [vmem:[%s4 + $0x4c] sm:$0xf]
    %v2724 = vld [vmem:[%s4 + $0x50] sm:$0xf]
    %v2725 = vld [vmem:[%s4 + $0x54] sm:$0xf]
    %v2726 = vld [vmem:[%s4 + $0x58] sm:$0xf]
    %v2727 = vld [vmem:[%s4 + $0x5c] sm:$0xf]
    %v2728 = vld [vmem:[%s4 + $0x60] sm:$0xf]
    %v2729 = vld [vmem:[%s4 + $0x64] sm:$0xf]
    %v2730 = vld [vmem:[%s4 + $0x68] sm:$0xf]
    %v2731 = vld [vmem:[%s4 + $0x6c] sm:$0xf]
    %v2732 = vld [vmem:[%s4 + $0x70] sm:$0xf]
    %v2733 = vld [vmem:[%s4 + $0x74] sm:$0xf]
    %v2734 = vld [vmem:[%s4 + $0x78] sm:$0xf]
    %v2735 = vld [vmem:[%s4 + $0x7c] sm:$0xf]
    %v2736 = vlaneseq
    %v2737 = vshrl.u32 %v2736, 7
    %v2738 = vsub.s32 4, %v2737
    %v2739 = vrot.slane %v80, %v2738
    %v2772 = vunpack.c.l.b16 %v2704
    %v2773 = vunpack.c.l.b16 %v2705
    %v2774 = vunpack.c.l.b16 %v2706
    %v2775 = vunpack.c.l.b16 %v2707
    %v2776 = vunpack.c.l.b16 %v2708
    %v2777 = vunpack.c.l.b16 %v2709
    %v2778 = vunpack.c.l.b16 %v2710
    %v2779 = vunpack.c.l.b16 %v2711
    %v2780 = vunpack.c.l.b16 %v2712
    %v2781 = vunpack.c.l.b16 %v2713
    %v2782 = vunpack.c.l.b16 %v2714
    %v2783 = vunpack.c.l.b16 %v2715
    %v2784 = vunpack.c.l.b16 %v2716
    %v2785 = vunpack.c.l.b16 %v2717
    %v2786 = vunpack.c.l.b16 %v2718
    %v2787 = vunpack.c.l.b16 %v2719
    %v2788 = vunpack.c.l.b16 %v2720
    %v2789 = vunpack.c.l.b16 %v2721
    %v2790 = vunpack.c.l.b16 %v2722
    %v2791 = vunpack.c.l.b16 %v2723
    %v2792 = vunpack.c.l.b16 %v2724
    %v2793 = vunpack.c.l.b16 %v2725
    %v2794 = vunpack.c.l.b16 %v2726
    %v2795 = vunpack.c.l.b16 %v2727
    %v2796 = vunpack.c.l.b16 %v2728
    %v2797 = vunpack.c.l.b16 %v2729
    %v2798 = vunpack.c.l.b16 %v2730
    %v2799 = vunpack.c.l.b16 %v2731
    %v2800 = vunpack.c.l.b16 %v2732
    %v2801 = vunpack.c.l.b16 %v2733
    %v2802 = vunpack.c.l.b16 %v2734
    %v2803 = vunpack.c.l.b16 %v2735
    %v2804 = vpack.c.b16 %v2773, %v2772
    %v2805 = vpack.c.b16 %v2775, %v2774
    %v2806 = vpack.c.b16 %v2777, %v2776
    %v2807 = vpack.c.b16 %v2779, %v2778
    %v2808 = vpack.c.b16 %v2781, %v2780
    %v2809 = vpack.c.b16 %v2783, %v2782
    %v2810 = vpack.c.b16 %v2785, %v2784
    %v2811 = vpack.c.b16 %v2787, %v2786
    %v2812 = vpack.c.b16 %v2789, %v2788
    %v2813 = vpack.c.b16 %v2791, %v2790
    %v2814 = vpack.c.b16 %v2793, %v2792
    %v2815 = vpack.c.b16 %v2795, %v2794
    %v2816 = vpack.c.b16 %v2797, %v2796
    %v2817 = vpack.c.b16 %v2799, %v2798
    %v2818 = vpack.c.b16 %v2801, %v2800
    %v2819 = vpack.c.b16 %v2803, %v2802
    %2836 = vmatprep.subr.bf16.mxu0 0
    %2837 = vmatpush1.bf16.msra.mxu0 %v2811
    %2838 = vmatprep.subr.bf16.mxu0 0
    %2839 = vmatpush1.bf16.msra.mxu0 %v2810
    %2840 = vmatprep.subr.bf16.mxu0 0
    %2841 = vmatpush1.bf16.msra.mxu0 %v2809
    %2842 = vmatprep.subr.bf16.mxu0 0
    %2843 = vmatpush1.bf16.msra.mxu0 %v2808
    %2844 = vmatprep.subr.bf16.mxu0 0
    %2845 = vmatpush1.bf16.msra.mxu0 %v2807
    %2846 = vmatprep.subr.bf16.mxu0 0
    %2847 = vmatpush1.bf16.msra.mxu0 %v2806
    %2848 = vmatprep.subr.bf16.mxu0 0
    %2849 = vmatpush1.bf16.msra.mxu0 %v2805
    %2850 = vmatprep.subr.bf16.mxu0 0
    %2851 = vmatpush1.bf16.msra.mxu0 %v2804
    %2852 = vmatprep.subr.bf16.mxu0 0
    %2853 = vmatpush2.bf16.msra.mxu0 %v2819
    %2854 = vmatprep.subr.bf16.mxu0 0
    %2855 = vmatpush2.bf16.msra.mxu0 %v2818
    %2856 = vmatprep.subr.bf16.mxu0 0
    %2857 = vmatpush2.bf16.msra.mxu0 %v2817
    %2858 = vmatprep.subr.bf16.mxu0 0
    %2859 = vmatpush2.bf16.msra.mxu0 %v2816
    %2860 = vmatprep.subr.bf16.mxu0 0
    %2861 = vmatpush2.bf16.msra.mxu0 %v2815
    %2862 = vmatprep.subr.bf16.mxu0 0
    %2863 = vmatpush2.bf16.msra.mxu0 %v2814
    %2864 = vmatprep.subr.bf16.mxu0 0
    %2865 = vmatpush2.bf16.msra.mxu0 %v2813
    %2866 = vmatprep.subr.bf16.mxu0 0
    %2867 = vmatpush2.bf16.msra.mxu0 %v2812
    %2868 = vmatprep.mubr.bf16.mxu0 %v2703
    %2869 = vmatmul.mubr.bf16.gmra.mxu0 %v2702
    %v2870 = vpop.f32.mrf.mxu0
    %v2871 = vadd.f32 %v2739, %v2870
    %v2872 = vpop.f32.mrf.mxu0
    %v2873 = vpop.f32.mrf.mxu0
    %v2874 = vadd.f32 %v2739, %v2873
    %v2875 = vpop.f32.mrf.mxu0
    %2876 = vdwg.mxu0
    %v2877 = vadd.f32 %v2871, %v2569
    %v2878 = vadd.f32 %v2874, %v2570
    %v2879 = vsel %vm235, %v2877, 0.0
    %2880 = vadd.xlane.f32.xlu0 %v2879
    %v2881 = vpop.xlane.xlu0 %2880
    %v2882 = vsel %vm235, %v2878, 0.0
    %2883 = vadd.xlane.f32.xlu0 %v2882
    %v2884 = vpop.xlane.xlu0 %2883
    %v2885 = vmul.f32 %v2881, %v2538
    %v2886 = vmul.f32 %v2884, %v2538
    %v2887 = vsub.f32 %v2877, %v2885
    %v2888 = vsub.f32 %v2878, %v2886
    %v2889 = vmul.f32 %v2887, %v2887
    %v2890 = vmul.f32 %v2888, %v2888
    %v2891 = vsel %vm235, %v2889, 0.0
    %2892 = vadd.xlane.f32.xlu0 %v2891
    %v2893 = vpop.xlane.xlu0 %2892
    %v2894 = vsel %vm235, %v2890, 0.0
    %2895 = vadd.xlane.f32.xlu0 %v2894
    %v2896 = vpop.xlane.xlu0 %2895
    %v2897 = vmul.f32 %v2893, %v2538
    %v2898 = vmul.f32 %v2896, %v2538
    %v2899 = vadd.f32 %v2897, 1e-05
    %v2900 = vadd.f32 %v2898, 1e-05
    %v2901 = vrsqrt.pop %v2899
    %v2902 = vrsqrt.pop %v2900
    %v2903 = vmul.f32 %v2887, %v2901
    %v2904 = vmul.f32 %v2888, %v2902
    %v2905 = vlaneseq
    %v2906 = vshrl.u32 %v2905, 7
    %v2907 = vsub.s32 5, %v2906
    %v2908 = vrot.slane %v80, %v2907
    %v2909 = vmul.f32 %v2903, %v2908
    %v2910 = vmul.f32 %v2904, %v2908
    %v2911 = vlaneseq
    %v2912 = vshrl.u32 %v2911, 7
    %v2913 = vsub.s32 6, %v2912
    %v2914 = vrot.slane %v80, %v2913
    %v2915 = vadd.f32 %v2909, %v2914
    %v2916 = vadd.f32 %v2910, %v2914
    %2917 = vst.msk [vmem:[#allocation10] sm:$0xff] %vm235, %v2915
    %2918 = vst.msk [vmem:[#allocation10 + $0x8] sm:$0xff] %vm235, %v2916
    // Predicated region
    $region42: #{tpu_custom_call.1} parent=1 // pred_check
      _
    $region43: #{tpu_custom_call.1} parent=1 // pred_check_branch
      %2920 = sbr.rel (0) target = $region45
    $region44: #{tpu_custom_call.1} parent=1 // pred_region
      %s2922 = ssub.s32 256, 256
      %2923 = vsyncadd [#allocation4], %s2922
      %s2924 = sshll.u32 [#allocation10], 4
      %s2925 = int_to_ptr.vmem [resolvable:$true] %s2924
      %2930 = dma.vmem_to_hbm [thread:$0]  %s2925, 256, %s6, [#allocation4], 128, 128, 8
    $region45: #{tpu_custom_call.1} parent=1 // pred_fallthru
      _
    // Predicated region
    $region46: #{tpu_custom_call.1} parent=1 // pred_check
      _
    $region47: #{tpu_custom_call.1} parent=1 // pred_check_branch
      %2932 = sbr.rel (0) target = $region49
    $region48: #{tpu_custom_call.1} parent=1 // pred_region
      %2933 = dma.done [#allocation4], 256
    $region49: #{tpu_custom_call.1} parent=1 // pred_fallthru
      _
    %2934 = vsyncpa [#allocation3], 1
    %2935 = vsyncpa [#allocation6], 1
    %2936 = vsyncpa [#allocation9], 1
    %2937 = vsyncpa [#allocation4], 1

</llo_original>
